<compile_context>
chip_gen: v7x
topology: tpu7x:2x2x1
jax: 0.10.0
libtpu: 0.0.40
codegen_flags: <defaults>
</compile_context>

<pallas_src>
import functools
import math

import jax
import jax.numpy as jnp
import numpy as np
from jax.experimental import pallas as pl
from jax.experimental.pallas import tpu as pltpu

HIDDEN = 32          # synthetic stand-in for Mask2Former's 256-dim features
SCALES = (8, 4, 2)   # coarse -> fine; the finest scale defines the target size


# ---------------------------------------------------------------------------
# In-kernel helpers
# ---------------------------------------------------------------------------
def _pool_rows(v, r):
    """Average groups of `r` consecutive rows of a 2-D f32 value (VPU work)."""
    if r == 1:
        return v
    rows, k = v.shape
    v3 = v.reshape(rows // r, r, k)
    out = v3[:, 0, :]
    for j in range(1, r):            # static unroll, r <= 4
        out = out + v3[:, j, :]
    return out * (1.0 / r)


def _fused_kernel(x_ref, wproj_ref, bias_ref, o_ref, *,
                  scales, s_min, chunk_m, compute_dtype):
    """One (batch, H-tile) block of: pool -> project -> upsample -> sum.

    x_ref    : (1, TILE_HIN, CIN*WIN)   channels-folded image rows (bf16)
    wproj_ref: (S, CIN*WIN, WO*HID)     W-pool + 1x1-proj + W-upsample constant
    bias_ref : (1, WO*HID)              sum over scales of the tiled biases (f32)
    o_ref    : (1, TILE_HO, WO*HID)     lane-dense channels-last output (f32)
    """
    k_dim = x_ref.shape[2]
    tile_ho = o_ref.shape[1]
    n_out = o_ref.shape[2]
    chunk_hin = chunk_m * s_min
    num_chunks = tile_ho // chunk_m

    # Hoisted once per grid step (never re-broadcast inside the loops).
    bias_tile = jnp.broadcast_to(bias_ref[...], (chunk_m, n_out))

    for ci in range(num_chunks):                    # static unroll; bounds the
        row_in = ci * chunk_hin                     # live accumulator (<=64 rows)
        x = x_ref[0, pl.ds(row_in, chunk_hin), :].astype(jnp.float32)
        # H-pool to the finest output grid (VPU, linear cost — no hmat matmul).
        base = _pool_rows(x, s_min)                 # (chunk_m, CIN*WIN)
        acc = bias_tile
        for si, s in enumerate(scales):             # static unroll (S = 3)
            f = s // s_min                          # nearest-upsample factor
            hp = _pool_rows(base, f)                # (chunk_m // f, CIN*WIN)
            # W-pool + 1x1 channel projection + W-replication in one matmul:
            # (chunk_m//f, CIN*WIN) @ (CIN*WIN, WO*HID), f32 accumulation.
            p = jnp.dot(hp.astype(compute_dtype), wproj_ref[si],
                        preferred_element_type=jnp.float32)
            if f > 1:
                # H-upsample = replicate rows f times (sublane broadcast).
                p = jnp.broadcast_to(p[:, None, :], (chunk_m // f, f, n_out))
                p = p.reshape(chunk_m, n_out)
            acc = acc + p
        o_ref[0, pl.ds(ci * chunk_m, chunk_m), :] = acc.astype(o_ref.dtype)


# ---------------------------------------------------------------------------
# Wrapper-side helpers (run once, outside the kernel)
# ---------------------------------------------------------------------------
def _tpu_vmem_capacity_bytes():
    try:
        cap = int(getattr(pltpu.get_tpu_info(), "vmem_capacity_bytes", 0))
        if cap > 0:
            return cap
    except Exception:
        pass
    return 64 << 20          # conservative fallback (v7x per-core VMEM)


def _choose_tile_ho(ho, n_batch, f_lcm, s_min, k_dim, n_out,
                    const_bytes, in_elem_bytes, vmem_budget):
    """Largest H-tile (in output rows) that divides Ho, keeps pooling windows
    and sublane tiling aligned, and fits the double-buffered working set
    (input + output blocks + resident constants) inside the VMEM budget."""
    align = 8 * f_lcm // math.gcd(8, f_lcm)          # lcm(8, f_lcm)
    if ho <= align or ho % align != 0:
        cands = [ho]                                 # full-H block always legal
    else:
        cands = [t for t in range(align, ho + 1, align) if ho % t == 0]

    def fits(t):
        in_blk = t * s_min * k_dim * in_elem_bytes
        out_blk = t * n_out * 4
        # Input/output blocks are double-buffered by the pipeline; count the
        # constants twice as well (worst case with default buffering).
        return 2 * (in_blk + out_blk) + 2 * const_bytes <= vmem_budget

    fitting = [t for t in cands if fits(t)]
    # TODO(synk): add a W grid axis when even the smallest H-tile plus the
    # resident constants exceed the VMEM budget (very wide images).
    pool = fitting if fitting else [min(cands)]
    tile = max(pool)
    if n_batch == 1:
        # v7x shards the parallel grid axes over 2 TensorCores; make sure
        # there are >= 2 grid steps so neither core sits idle.
        multi = [t for t in pool if ho // t >= 2]
        if multi:
            tile = max(multi)
    return tile


def _choose_chunk_m(tile_ho, f_lcm, cap=64):
    """Largest in-kernel row chunk <= cap that divides tile_ho and keeps the
    coarse pooling groups aligned (bounds accumulator vreg pressure)."""
    if tile_ho <= cap:
        return tile_ho
    best = f_lcm
    for c in range(f_lcm, cap + 1, f_lcm):
        if tile_ho % c == 0:
            best = c
    return best


def _build_constants(weights, biases, scales, win, wo, hid, s_min, compute_dtype):
    """Fold (W-avg-pool, 1x1-conv, W-nearest-upsample) into per-scale constants.

    wproj[s][c*WIN + w, W*HID + d] = weight_s[c, d] / s   if  w//s == W//(s/s_min)
    bias_row[W*HID + d]            = sum_s bias_s[d]
    """
    cin = np.asarray(weights[0]).shape[0]
    col_in = np.arange(win)[:, None]
    col_out = np.arange(wo)[None, :]
    wprojs = []
    bias_row = np.zeros((wo * hid,), np.float32)
    for s, w_s, b_s in zip(scales, weights, biases):
        f = s // s_min
        sel = (col_in // s == col_out // f).astype(np.float32) / s      # (WIN, WO)
        fused = np.einsum("wW,cd->cwWd", sel, np.asarray(w_s, np.float32))
        wprojs.append(fused.reshape(cin * win, wo * hid))
        bias_row += np.tile(np.asarray(b_s, np.float32), wo)
    wproj = jnp.asarray(np.stack(wprojs, axis=0), dtype=compute_dtype)   # (S,K,N)
    return wproj, jnp.asarray(bias_row.reshape(1, wo * hid), jnp.float32)


def mask2former_merge_forward(img_nchw, weights, biases, scales=SCALES,
                              compute_dtype=jnp.bfloat16, channels_last=False):
    n, cin, hin, win = img_nchw.shape
    s_min = min(scales)
    assert scales[-1] == s_min, "last (finest) scale defines the target size"
    for s in scales:
        # TODO(synk): PyTorch F.interpolate(nearest) uses floor(i*in/out) for
        # non-integer factors; only exact integer scale factors are handled.
        assert hin % s == 0 and win % s == 0 and s % s_min == 0, \
            "integer scale factors required"
    ho, wo = hin // s_min, win // s_min
    hid = weights[0].shape[1]
    num_s = len(scales)
    k_dim = cin * win
    n_out = wo * hid

    f_lcm = 1
    for s in scales:
        f = s // s_min
        f_lcm = f_lcm * f // math.gcd(f_lcm, f)

    wproj, bias_row = _build_constants(weights, biases, scales, win, wo, hid,
                                       s_min, compute_dtype)
    const_bytes = (wproj.size * wproj.dtype.itemsize
                   + bias_row.size * bias_row.dtype.itemsize)

    in_elem = jnp.dtype(compute_dtype).itemsize
    vmem_cap = _tpu_vmem_capacity_bytes()
    vmem_budget = min(vmem_cap // 4, 24 << 20)       # ~24 MiB v5e/v6e, ~16 MiB v7x
    vmem_limit = int(min(vmem_cap * 3 // 4, 96 << 20))

    tile_ho = _choose_tile_ho(ho, n, f_lcm, s_min, k_dim, n_out,
                              const_bytes, in_elem, vmem_budget)
    tile_hin = tile_ho * s_min
    chunk_m = _choose_chunk_m(tile_ho, f_lcm)

    # NCHW -> (N, HIN, CIN*WIN): one XLA transpose so the kernel's contraction
    # K is CIN*WIN and the per-tile input DMA is one contiguous slab.
    x_flat = jnp.transpose(img_nchw, (0, 2, 1, 3)).reshape(n, hin, k_dim)
    x_flat = x_flat.astype(compute_dtype)

    flops = 2 * n * sum((ho // (s // s_min)) * k_dim * n_out for s in scales)
    bytes_accessed = (n * hin * k_dim * in_elem + const_bytes
                      + n * ho * n_out * 4)
    cost = pl.CostEstimate(flops=int(flops), transcendentals=0,
                           bytes_accessed=int(bytes_accessed))

    kernel = functools.partial(_fused_kernel, scales=tuple(scales), s_min=s_min,
                               chunk_m=chunk_m, compute_dtype=compute_dtype)

    out_flat = pl.pallas_call(
        kernel,
        out_shape=jax.ShapeDtypeStruct((n, ho, n_out), jnp.float32),
        grid=(n, ho // tile_ho),
        in_specs=[
            # channels-folded image rows for this tile (one contiguous slab)
            pl.BlockSpec((1, tile_hin, k_dim), lambda b, i: (b, i, 0)),
            # resident constants: same block every grid step (no re-fetch)
            pl.BlockSpec((num_s, k_dim, n_out), lambda b, i: (0, 0, 0)),
            pl.BlockSpec((1, n_out), lambda b, i: (0, 0)),
        ],
        # lane-dense output: last dim WO*HID is a multiple of 128
        out_specs=pl.BlockSpec((1, tile_ho, n_out), lambda b, i: (b, i, 0)),
        compiler_params=pltpu.CompilerParams(
            dimension_semantics=("parallel", "parallel"),
            vmem_limit_bytes=vmem_limit),
        cost_estimate=cost,
    )(x_flat, wproj, bias_row)

    out_nhwc = out_flat.reshape(n, ho, wo, hid)
    if channels_last:
        return out_nhwc                      # skip the boundary transpose
    return jnp.transpose(out_nhwc, (0, 3, 1, 2))     # NCHW (PyTorch convention)


# ---------------------------------------------------------------------------
# Module wrapper (synthetic stand-in for the pretrained pixel-level encoder)
# ---------------------------------------------------------------------------
class Mask2FormerExtractorPallas:
    """Deterministic stand-in for Mask2Former's pixel-level encoder; the
    multi-scale pool -> project -> nearest-resize -> sum forward is computed
    exactly, fully fused in a single Pallas kernel."""

    def __init__(self, key, in_ch=3, hidden=HIDDEN, scales=SCALES):
        self.scales = scales
        keys = jax.random.split(key, 2 * len(scales))
        self.weights, self.biases = [], []
        for idx in range(len(scales)):
            self.weights.append(
                jax.random.normal(keys[2 * idx], (in_ch, hidden), jnp.float32) * 0.1)
            self.biases.append(
                jax.random.normal(keys[2 * idx + 1], (hidden,), jnp.float32) * 0.1)

    def __call__(self, img_nchw):
        return mask2former_merge_forward(img_nchw, self.weights, self.biases,
                                         self.scales)


# ---------------------------------------------------------------------------
# Pure-JAX reference of the same forward (for verification)
# ---------------------------------------------------------------------------
def _ref_avg_pool(x_nhwc, f):
    n, h, w, c = x_nhwc.shape
    return x_nhwc.reshape(n, h // f, f, w // f, f, c).mean(axis=(2, 4))


def _ref_forward(img_nchw, weights, biases, scales):
    x = jnp.transpose(img_nchw, (0, 2, 3, 1))             # NCHW -> NHWC
    s_min = min(scales)
    out = 0.0
    for s, w, b in zip(scales, weights, biases):
        proj = jnp.einsum("nhwc,cd->nhwd", _ref_avg_pool(x, s), w) + b
        f = s // s_min
        out = out + jnp.repeat(jnp.repeat(proj, f, axis=1), f, axis=2)
    return jnp.transpose(out, (0, 3, 1, 2))                # back to NCHW


if __name__ == "__main__":
    key = jax.random.PRNGKey(0)
    k_img, k_params = jax.random.split(key)
    # PyTorch-convention NCHW RGB image, small shapes
    img = jax.random.normal(k_img, (2, 3, 32, 32), jnp.float32)

    model = Mask2FormerExtractorPallas(k_params)
    out = jax.block_until_ready(model(img))
    assert out.shape == (2, HIDDEN, 16, 16), out.shape

    # Reference 1: identical math with the same bf16-quantized image/weights
    # (isolates the kernel's arithmetic from the intended precision loss).
    img_q = img.astype(jnp.bfloat16).astype(jnp.float32)
    w_q = [w.astype(jnp.bfloat16).astype(jnp.float32) for w in model.weights]
    ref_q = _ref_forward(img_q, w_q, model.biases, model.scales)
    err_q = float(jnp.max(jnp.abs(out - ref_q)))
    assert jnp.allclose(out, ref_q, atol=3e-2, rtol=3e-2), err_q

    # Reference 2: full-f32 module math (loose bf16-appropriate tolerance).
    ref = _ref_forward(img, model.weights, model.biases, model.scales)
    err = float(jnp.max(jnp.abs(out - ref)))
    assert jnp.allclose(out, ref, atol=1.5e-1, rtol=1.5e-1), err

    print("KERNEL_OK")
</pallas_src>

<mosaic_0001>
module attributes {stable_mosaic.version = 11 : i64} {
  func.func @_fused_kernel(%arg0: i32, %arg1: i32, %arg2: memref<1x32x96xbf16, #tpu.memory_space<vmem>>, %arg3: memref<3x96x512xbf16, #tpu.memory_space<vmem>>, %arg4: memref<1x512xf32, #tpu.memory_space<vmem>>, %arg5: memref<1x16x512xf32, #tpu.memory_space<vmem>>) attributes {dimension_semantics = [#tpu.dimension_semantics<parallel>, #tpu.dimension_semantics<parallel>], iteration_bounds = array<i64: 2, 1>, scalar_prefetch = 0 : i64, scratch_operands = 0 : i64, tpu.core_type = #tpu.core_type<tc>, window_params = [{transform_indices = @transform_0, window_bounds = array<i64: 1, 32, 96>}, {pipeline_mode = #tpu.pipeline_mode<synchronous>, transform_indices = @transform_1, window_bounds = array<i64: 3, 96, 512>}, {pipeline_mode = #tpu.pipeline_mode<synchronous>, transform_indices = @transform_2, window_bounds = array<i64: 1, 512>}, {transform_indices = @transform_3, window_bounds = array<i64: 1, 16, 512>}]} {
    %c0 = arith.constant 0 : index
    %c0_0 = arith.constant 0 : index
    %0 = vector.load %arg4[%c0, %c0_0] : memref<1x512xf32, #tpu.memory_space<vmem>>, vector<1x512xf32>
    %1 = vector.shape_cast %0 : vector<1x512xf32> to vector<1x512xf32>
    %2 = vector.broadcast %1 : vector<1x512xf32> to vector<16x512xf32>
    %c0_1 = arith.constant 0 : index
    %c0_2 = arith.constant 0 : index
    %c0_3 = arith.constant 0 : index
    %3 = vector.load %arg2[%c0_1, %c0_2, %c0_3] : memref<1x32x96xbf16, #tpu.memory_space<vmem>>, vector<1x32x96xbf16>
    %4 = vector.shape_cast %3 : vector<1x32x96xbf16> to vector<32x96xbf16>
    %5 = arith.extf %4 : vector<32x96xbf16> to vector<32x96xf32>
    %6 = vector.shape_cast %5 : vector<32x96xf32> to vector<16x2x96xf32>
    %7 = vector.extract_strided_slice %6 {offsets = [0, 0, 0], sizes = [16, 1, 96], strides = [1, 1, 1]} : vector<16x2x96xf32> to vector<16x1x96xf32>
    %8 = vector.shape_cast %7 : vector<16x1x96xf32> to vector<16x96xf32>
    %9 = vector.extract_strided_slice %6 {offsets = [0, 1, 0], sizes = [16, 1, 96], strides = [1, 1, 1]} : vector<16x2x96xf32> to vector<16x1x96xf32>
    %10 = vector.shape_cast %9 : vector<16x1x96xf32> to vector<16x96xf32>
    %11 = arith.addf %8, %10 : vector<16x96xf32>
    %cst = arith.constant 5.000000e-01 : f32
    %12 = vector.broadcast %cst : f32 to vector<16x96xf32>
    %13 = arith.mulf %11, %12 : vector<16x96xf32>
    %14 = vector.shape_cast %13 : vector<16x96xf32> to vector<4x4x96xf32>
    %15 = vector.extract_strided_slice %14 {offsets = [0, 0, 0], sizes = [4, 1, 96], strides = [1, 1, 1]} : vector<4x4x96xf32> to vector<4x1x96xf32>
    %16 = vector.shape_cast %15 : vector<4x1x96xf32> to vector<4x96xf32>
    %17 = vector.extract_strided_slice %14 {offsets = [0, 1, 0], sizes = [4, 1, 96], strides = [1, 1, 1]} : vector<4x4x96xf32> to vector<4x1x96xf32>
    %18 = vector.shape_cast %17 : vector<4x1x96xf32> to vector<4x96xf32>
    %19 = arith.addf %16, %18 : vector<4x96xf32>
    %20 = vector.extract_strided_slice %14 {offsets = [0, 2, 0], sizes = [4, 1, 96], strides = [1, 1, 1]} : vector<4x4x96xf32> to vector<4x1x96xf32>
    %21 = vector.shape_cast %20 : vector<4x1x96xf32> to vector<4x96xf32>
    %22 = arith.addf %19, %21 : vector<4x96xf32>
    %23 = vector.extract_strided_slice %14 {offsets = [0, 3, 0], sizes = [4, 1, 96], strides = [1, 1, 1]} : vector<4x4x96xf32> to vector<4x1x96xf32>
    %24 = vector.shape_cast %23 : vector<4x1x96xf32> to vector<4x96xf32>
    %25 = arith.addf %22, %24 : vector<4x96xf32>
    %cst_4 = arith.constant 2.500000e-01 : f32
    %26 = vector.broadcast %cst_4 : f32 to vector<4x96xf32>
    %27 = arith.mulf %25, %26 : vector<4x96xf32>
    %28 = arith.truncf %27 : vector<4x96xf32> to vector<4x96xbf16>
    %c0_5 = arith.constant 0 : index
    %c0_6 = arith.constant 0 : index
    %c0_7 = arith.constant 0 : index
    %29 = vector.load %arg3[%c0_5, %c0_6, %c0_7] : memref<3x96x512xbf16, #tpu.memory_space<vmem>>, vector<1x96x512xbf16>
    %30 = vector.shape_cast %29 : vector<1x96x512xbf16> to vector<96x512xbf16>
    %cst_8 = arith.constant dense<0.000000e+00> : vector<4x512xf32>
    %31 = tpu.matmul %28, %30, %cst_8 {dimension_numbers = #tpu.dot_dimension_numbers<[1], [0], [0], [1], [0, 0, 1, 1], [], []>} : vector<4x96xbf16>, vector<96x512xbf16>, vector<4x512xf32> -> vector<4x512xf32>
    %32 = vector.shape_cast %31 : vector<4x512xf32> to vector<4x1x512xf32>
    %33 = vector.shape_cast %32 : vector<4x1x512xf32> to vector<4x1x512xf32>
    %34 = vector.broadcast %33 : vector<4x1x512xf32> to vector<4x4x512xf32>
    %35 = vector.shape_cast %34 : vector<4x4x512xf32> to vector<16x512xf32>
    %36 = arith.addf %2, %35 : vector<16x512xf32>
    %37 = vector.shape_cast %13 : vector<16x96xf32> to vector<8x2x96xf32>
    %38 = vector.extract_strided_slice %37 {offsets = [0, 0, 0], sizes = [8, 1, 96], strides = [1, 1, 1]} : vector<8x2x96xf32> to vector<8x1x96xf32>
    %39 = vector.shape_cast %38 : vector<8x1x96xf32> to vector<8x96xf32>
    %40 = vector.extract_strided_slice %37 {offsets = [0, 1, 0], sizes = [8, 1, 96], strides = [1, 1, 1]} : vector<8x2x96xf32> to vector<8x1x96xf32>
    %41 = vector.shape_cast %40 : vector<8x1x96xf32> to vector<8x96xf32>
    %42 = arith.addf %39, %41 : vector<8x96xf32>
    %cst_9 = arith.constant 5.000000e-01 : f32
    %43 = vector.broadcast %cst_9 : f32 to vector<8x96xf32>
    %44 = arith.mulf %42, %43 : vector<8x96xf32>
    %45 = arith.truncf %44 : vector<8x96xf32> to vector<8x96xbf16>
    %c1 = arith.constant 1 : index
    %c0_10 = arith.constant 0 : index
    %c0_11 = arith.constant 0 : index
    %46 = vector.load %arg3[%c1, %c0_10, %c0_11] : memref<3x96x512xbf16, #tpu.memory_space<vmem>>, vector<1x96x512xbf16>
    %47 = vector.shape_cast %46 : vector<1x96x512xbf16> to vector<96x512xbf16>
    %cst_12 = arith.constant dense<0.000000e+00> : vector<8x512xf32>
    %48 = tpu.matmul %45, %47, %cst_12 {dimension_numbers = #tpu.dot_dimension_numbers<[1], [0], [0], [1], [0, 0, 1, 1], [], []>} : vector<8x96xbf16>, vector<96x512xbf16>, vector<8x512xf32> -> vector<8x512xf32>
    %49 = vector.shape_cast %48 : vector<8x512xf32> to vector<8x1x512xf32>
    %50 = vector.shape_cast %49 : vector<8x1x512xf32> to vector<8x1x512xf32>
    %51 = vector.broadcast %50 : vector<8x1x512xf32> to vector<8x2x512xf32>
    %52 = vector.shape_cast %51 : vector<8x2x512xf32> to vector<16x512xf32>
    %53 = arith.addf %36, %52 : vector<16x512xf32>
    %54 = arith.truncf %13 : vector<16x96xf32> to vector<16x96xbf16>
    %c2 = arith.constant 2 : index
    %c0_13 = arith.constant 0 : index
    %c0_14 = arith.constant 0 : index
    %55 = vector.load %arg3[%c2, %c0_13, %c0_14] : memref<3x96x512xbf16, #tpu.memory_space<vmem>>, vector<1x96x512xbf16>
    %56 = vector.shape_cast %55 : vector<1x96x512xbf16> to vector<96x512xbf16>
    %cst_15 = arith.constant dense<0.000000e+00> : vector<16x512xf32>
    %57 = tpu.matmul %54, %56, %cst_15 {dimension_numbers = #tpu.dot_dimension_numbers<[1], [0], [0], [1], [0, 0, 1, 1], [], []>} : vector<16x96xbf16>, vector<96x512xbf16>, vector<16x512xf32> -> vector<16x512xf32>
    %58 = arith.addf %53, %57 : vector<16x512xf32>
    %c0_16 = arith.constant 0 : index
    %c0_17 = arith.constant 0 : index
    %c0_18 = arith.constant 0 : index
    %59 = vector.load %arg5[%c0_16, %c0_17, %c0_18] : memref<1x16x512xf32, #tpu.memory_space<vmem>>, vector<1x16x512xf32>
    %60 = vector.shape_cast %59 : vector<1x16x512xf32> to vector<16x512xf32>
    %61 = vector.shape_cast %58 : vector<16x512xf32> to vector<1x16x512xf32>
    tpu.vector_store %arg5[%c0_16, %c0_17, %c0_18], %61 {strides = array<i32>} : memref<1x16x512xf32, #tpu.memory_space<vmem>>, vector<1x16x512xf32>,
    return
  }
  func.func @transform_0(%arg0: i32, %arg1: i32) -> (i32, i32, i32) {
    %c0_i32 = arith.constant 0 : i32
    %c0_i32_0 = arith.constant 0 : i32
    return %arg0, %arg1, %c0_i32 : i32, i32, i32
  }
  func.func @transform_1(%arg0: i32, %arg1: i32) -> (i32, i32, i32) {
    %c0_i32 = arith.constant 0 : i32
    %c0_i32_0 = arith.constant 0 : i32
    %c0_i32_1 = arith.constant 0 : i32
    %c0_i32_2 = arith.constant 0 : i32
    return %c0_i32, %c0_i32_0, %c0_i32_1 : i32, i32, i32
  }
  func.func @transform_2(%arg0: i32, %arg1: i32) -> (i32, i32) {
    %c0_i32 = arith.constant 0 : i32
    %c0_i32_0 = arith.constant 0 : i32
    %c0_i32_1 = arith.constant 0 : i32
    return %c0_i32, %c0_i32_0 : i32, i32
  }
  func.func @transform_3(%arg0: i32, %arg1: i32) -> (i32, i32, i32) {
    %c0_i32 = arith.constant 0 : i32
    %c0_i32_0 = arith.constant 0 : i32
    return %arg0, %arg1, %c0_i32 : i32, i32, i32
  }
}

</mosaic_0001>

<llo_original>
// kernel: tpu_custom_call.1
$region0: #{tpu_custom_call.1}
  #allocation0 [shape = 'u32[]', space=smem, size = 0x4, offset = 0x4, fixed_abs, tag = 'smem constant byte address 0x4 - core index']
  #allocation1 [shape = 'u32[144,128]{1,0:T(1,128)}', space=vmem, size = 0x12000, scoped, tag = 'internal scratch']
  %s0 = inlined_call_operand.hbm [shape: bf16[2,32,96], index: 0, kind: input, shape index: {}]
  %s1 = inlined_call_operand.hbm [shape: bf16[3,96,512], index: 1, kind: input, shape index: {}]
  %s2 = inlined_call_operand.vmem [shape: f32[1,512], index: 2, kind: input, shape index: {}]
  %s3 = inlined_call_operand.hbm [shape: f32[2,16,512], index: 3, kind: output, shape index: {}]
  %s4 = sld [smem:[#allocation0]]
  $region53: #{tpu_custom_call.1} parent=0
    _
  %s6 = ssub.s32 1, %s4
  %s7 = scalar_select 0, %s6, %s4
  $region1: #{tpu_custom_call.1} parent=0
    #allocation2 [shape = 'u8[16384]{0}', space=vmem, size = 0x4000, scoped, tag = 'input window, operand 0']
    #allocation3 [shape = 's32[2]{0}', space=sflag, size = 0x8, scoped, tag = 'scoped memory for tpu_custom_call.1']
    #allocation4 [shape = 's32[2]{0}', space=sflag, size = 0x8, scoped, tag = 'scoped memory for tpu_custom_call.1']
    #allocation5 [shape = 'u8[294912]{0}', space=vmem, size = 0x48000, scoped, tag = 'input window, operand 1, single buffered']
    #allocation6 [shape = 's32[1]{0}', space=sflag, size = 0x4, scoped, tag = 'scoped memory for tpu_custom_call.1']
    #allocation7 [shape = 'u8[65536]{0}', space=vmem, size = 0x10000, scoped, tag = 'output window, operand 0']
    %8 = vsyncpa [#allocation3], 0
    %s9 = scalar_lea.sflag [#allocation3], 1
    %10 = vsyncpa %s9, 0
    %11 = vsyncpa [#allocation6], 0
    %12 = vsyncpa [#allocation4], 0
    %s13 = scalar_lea.sflag [#allocation4], 1
    %14 = vsyncpa %s13, 0
    loop: start=0, step=1, limit=4
    $region2: #{tpu_custom_call.1} parent=1 // loop_pre_header
      _
    $region3: #{tpu_custom_call.1} parent=1 // loop_header
      %s16 = sphi 0, %s20
      %p17 = scmp.ge.s32.totalorder %s16, 4
      %s23 = sphi 0, %s35
      %s24 = sphi 0, %s31
      %s25 = sphi 0, %s23
      %s26 = sphi 0, %s24
      %s27 = sphi 0, %s25
      %s28 = sphi 0, %s26
      %s40 = sphi 0, %s42
      %s43 = sphi 0, %s40
      %s44 = sphi 0, %s43
      %s60 = sphi 0, %s44
      %s64 = sphi 0, %s64
      %s66 = sphi 0, %s64
      %s67 = sphi 0, %s66
      %s81 = sphi 0, %s67
      %s85 = sphi 0, %s85
      %s87 = sphi 0, %s85
      %s88 = sphi 0, %s87
      %s102 = sphi 0, %s88
      %s110 = sphi 0, %s112
      %s113 = sphi 0, %s110
      %s114 = sphi 0, %s113
      %s130 = sphi 0, %s114
    $region4: #{tpu_custom_call.1} parent=1 // loop_header_branch
      %19 = sbr.rel (%p17) target = $region8
    $region5: #{tpu_custom_call.1} parent=1 // loop_body
      %s21 = ssub.s32 %s16, 1
      %s22 = ssub.s32 %s16, 2
      %s29 = sadd.s32 1, %s24
      %p30 = scmp.ge.s32.totalorder %s29, 1
      %s31 = scalar_select %p30, 0, %s29
      %s32 = sadd.s32 1, %s23
      %s33 = scalar_select %p30, %s32, %s23
      %p34 = scmp.ge.s32.totalorder %s33, 2
      %s35 = scalar_select %p34, 0, %s33
      %s36 = ssub.s32 %s23, %s35
      %s37 = ssub.s32 %s24, %s31
      %s38 = sor.u32 %s36, %s37
      %p39 = scmp.eq.s32.totalorder %s38, 0
      %s41 = sadd.s32 %s40, 1
      %s42 = scalar_select %p39, %s40, %s41
      %p45 = pneg %p39
      %p46 = scmp.eq.s32.totalorder %s16, 1
      %p47 = por %p45, %p46
      %p48 = scmp.ne.s32.totalorder %s40, %s43
      %p49 = scmp.eq.s32.totalorder %s16, 0
      %p50 = por %p48, %p49
      %p51 = scmp.ne.s32.totalorder %s40, %s43
      %p52 = scmp.eq.s32.totalorder %s21, 1
      %p53 = por %p51, %p52
      %p54 = scmp.ne.s32.totalorder %s43, %s44
      %p55 = scmp.eq.s32.totalorder %s21, 0
      %p56 = por %p54, %p55
      %p57 = scmp.ne.s32.totalorder %s43, %s44
      %p58 = scmp.eq.s32.totalorder %s22, 1
      %p59 = por %p57, %p58
      %p61 = scmp.ne.s32.totalorder %s44, %s60
      %p62 = scmp.eq.s32.totalorder %s22, 0
      %p63 = por %p61, %p62
      %s65 = sadd.s32 %s64, 1
      %p68 = scmp.eq.s32.totalorder %s16, 1
      %p69 = scmp.ne.s32.totalorder %s64, %s66
      %p70 = scmp.eq.s32.totalorder %s16, 0
      %p71 = por %p69, %p70
      %p72 = scmp.ne.s32.totalorder %s64, %s66
      %p73 = scmp.eq.s32.totalorder %s21, 1
      %p74 = por %p72, %p73
      %p75 = scmp.ne.s32.totalorder %s66, %s67
      %p76 = scmp.eq.s32.totalorder %s21, 0
      %p77 = por %p75, %p76
      %p78 = scmp.ne.s32.totalorder %s66, %s67
      %p79 = scmp.eq.s32.totalorder %s22, 1
      %p80 = por %p78, %p79
      %p82 = scmp.ne.s32.totalorder %s67, %s81
      %p83 = scmp.eq.s32.totalorder %s22, 0
      %p84 = por %p82, %p83
      %s86 = sadd.s32 %s85, 1
      %p89 = scmp.eq.s32.totalorder %s16, 1
      %p90 = scmp.ne.s32.totalorder %s85, %s87
      %p91 = scmp.eq.s32.totalorder %s16, 0
      %p92 = por %p90, %p91
      %p93 = scmp.ne.s32.totalorder %s85, %s87
      %p94 = scmp.eq.s32.totalorder %s21, 1
      %p95 = por %p93, %p94
      %p96 = scmp.ne.s32.totalorder %s87, %s88
      %p97 = scmp.eq.s32.totalorder %s21, 0
      %p98 = por %p96, %p97
      %p99 = scmp.ne.s32.totalorder %s87, %s88
      %p100 = scmp.eq.s32.totalorder %s22, 1
      %p101 = por %p99, %p100
      %p103 = scmp.ne.s32.totalorder %s88, %s102
      %p104 = scmp.eq.s32.totalorder %s22, 0
      %p105 = por %p103, %p104
      %s106 = ssub.s32 %s23, %s35
      %s107 = ssub.s32 %s24, %s31
      %s108 = sor.u32 %s106, %s107
      %p109 = scmp.eq.s32.totalorder %s108, 0
      %s111 = sadd.s32 %s110, 1
      %s112 = scalar_select %p109, %s110, %s111
      %p115 = pneg %p109
      %p116 = scmp.eq.s32.totalorder %s16, 1
      %p117 = por %p115, %p116
      %p118 = scmp.ne.s32.totalorder %s110, %s113
      %p119 = scmp.eq.s32.totalorder %s16, 0
      %p120 = por %p118, %p119
      %p121 = scmp.ne.s32.totalorder %s110, %s113
      %p122 = scmp.eq.s32.totalorder %s21, 1
      %p123 = por %p121, %p122
      %p124 = scmp.ne.s32.totalorder %s113, %s114
      %p125 = scmp.eq.s32.totalorder %s21, 0
      %p126 = por %p124, %p125
      %p127 = scmp.ne.s32.totalorder %s113, %s114
      %p128 = scmp.eq.s32.totalorder %s22, 1
      %p129 = por %p127, %p128
      %p131 = scmp.ne.s32.totalorder %s114, %s130
      %p132 = scmp.eq.s32.totalorder %s22, 0
      %p133 = por %p131, %p132
      %p134 = scmp.le.s32.totalorder 1, %s16
      %p135 = scmp.lt.s32.totalorder %s16, 3
      %p136 = pnand %p134, %p135
      %p137 = pneg %p136
      // Predicated region
      $region9: #{tpu_custom_call.1} parent=5 // pred_check
        _
      $region10: #{tpu_custom_call.1} parent=5 // pred_check_branch
        %139 = sbr.rel (%p136) target = $region12
      $region11: #{tpu_custom_call.1} parent=5 // pred_region
        %s140 = ssub.s32 %s16, 1
        // Predicated region
        $region13: #{tpu_custom_call.1} parent=11 // pred_check
          %p141 = pneg %p77
        $region14: #{tpu_custom_call.1} parent=11 // pred_check_branch
          %143 = sbr.rel (%p141) target = $region16
        $region15: #{tpu_custom_call.1} parent=11 // pred_region
          %s145 = ssub.s32 9216, 9216
          %146 = vsyncadd [#allocation6], %s145
          %s147 = sshll.u32 [#allocation5], 4
          %s148 = int_to_ptr.vmem [resolvable:$true] %s147
          %153 = dma.hbm_to_vmem [thread:$0]  %s1, 9216, %s148, [#allocation6], 256, 256, 16
        $region16: #{tpu_custom_call.1} parent=11 // pred_fallthru
          _
        // Predicated region
        $region17: #{tpu_custom_call.1} parent=11 // pred_check
          %p154 = pneg %p98
        $region18: #{tpu_custom_call.1} parent=11 // pred_check_branch
          %156 = sbr.rel (%p154) target = $region20
        $region19: #{tpu_custom_call.1} parent=11 // pred_region
          _
        $region20: #{tpu_custom_call.1} parent=11 // pred_fallthru
          _
      $region12: #{tpu_custom_call.1} parent=5 // pred_fallthru
        _
      %p157 = scmp.lt.s32.totalorder %s16, 2
      // Predicated region
      $region21: #{tpu_custom_call.1} parent=5 // pred_check
        %p158 = pneg %p157
      $region22: #{tpu_custom_call.1} parent=5 // pred_check_branch
        %160 = sbr.rel (%p158) target = $region24
      $region23: #{tpu_custom_call.1} parent=5 // pred_region
        // Predicated region
        $region25: #{tpu_custom_call.1} parent=23 // pred_check
          %p161 = pneg %p50
        $region26: #{tpu_custom_call.1} parent=23 // pred_check_branch
          %163 = sbr.rel (%p161) target = $region28
        $region27: #{tpu_custom_call.1} parent=23 // pred_region
          %s164 = sand.u32 %s40, 1
          %s165 = scalar_lea.sflag [#allocation3], %s164
          %s166 = sand.u32 %s40, 1
          %s167 = smul.addr %s166, 16
          %s168 = scalar_lea.vmem [#allocation2], %s167
          %s169 = smul.u32 4, %s24
          %s171 = ssub.s32 256, 256
          %172 = vsyncadd %s165, %s171
          %s173 = smul.addr %s23, 4
          %s174 = sadd.s32 %s169, %s173
          %s175 = smul.addr %s174, 64
          %s176 = scalar_lea.hbm %s0, %s175
          %s177 = sshll.u32 %s168, 4
          %s178 = int_to_ptr.vmem [resolvable:$true] %s177
          %183 = dma.hbm_to_vmem [thread:$0]  %s176, 256, %s178, %s165, 64, 64, 4
        $region28: #{tpu_custom_call.1} parent=23 // pred_fallthru
          _
      $region24: #{tpu_custom_call.1} parent=5 // pred_fallthru
        _
      %p184 = scmp.le.s32.totalorder 1, %s16
      %p185 = scmp.lt.s32.totalorder %s16, 3
      %p186 = pnand %p184, %p185
      %p187 = pneg %p186
      // Predicated region
      $region29: #{tpu_custom_call.1} parent=5 // pred_check
        _
      $region30: #{tpu_custom_call.1} parent=5 // pred_check_branch
        %189 = sbr.rel (%p186) target = $region32
      $region31: #{tpu_custom_call.1} parent=5 // pred_region
        %s190 = ssub.s32 %s16, 1
        %s191 = sand.u32 %s43, 1
        %s192 = scalar_lea.sflag [#allocation3], %s191
        %s193 = sand.u32 %s43, 1
        %s194 = smul.addr %s193, 16
        %s195 = scalar_lea.vmem [#allocation2], %s194
        // Predicated region
        $region33: #{tpu_custom_call.1} parent=31 // pred_check
          %p196 = pneg %p56
        $region34: #{tpu_custom_call.1} parent=31 // pred_check_branch
          %198 = sbr.rel (%p196) target = $region36
        $region35: #{tpu_custom_call.1} parent=31 // pred_region
          %199 = dma.done %s192, 256
        $region36: #{tpu_custom_call.1} parent=31 // pred_fallthru
          _
        // Predicated region
        $region37: #{tpu_custom_call.1} parent=31 // pred_check
          %p200 = pneg %p77
        $region38: #{tpu_custom_call.1} parent=31 // pred_check_branch
          %202 = sbr.rel (%p200) target = $region40
        $region39: #{tpu_custom_call.1} parent=31 // pred_region
          %203 = dma.done [#allocation6], 9216
        $region40: #{tpu_custom_call.1} parent=31 // pred_fallthru
          _
        %s204 = sand.u32 %s43, 1
        %s205 = scalar_lea.sflag [#allocation3], %s204
        %s206 = sand.u32 %s43, 1
        %s207 = smul.addr %s206, 16
        %s208 = scalar_lea.vmem [#allocation2], %s207
        %p209 = pneg %p56
        %p210 = pneg %p53
        %p211 = pneg %p77
        %p212 = pneg %p74
        %p213 = pneg %p98
        %p214 = pneg %p95
        %p215 = pneg %p126
        %p216 = pneg %p123
        %s217 = sand.u32 %s113, 1
        %s218 = scalar_lea.sflag [#allocation4], %s217
        %s219 = sand.u32 %s113, 1
        %s220 = smul.addr %s219, 64
        %s221 = scalar_lea.vmem [#allocation7], %s220
        %s222 = smul.u32 4, %s26
        %s223 = smul.u32 2, %s26
        %v225 = vld [vmem:[%s2] sm:$0xf]
        %v227 = vlaneseq
        %v228 = vshrl.u32 %v227, 7
        %v229 = vsub.s32 0, %v228
        %v230 = vrot.slane %v225, %v229
        %v231 = vlaneseq
        %v232 = vshrl.u32 %v231, 7
        %v233 = vsub.s32 1, %v232
        %v234 = vrot.slane %v225, %v233
        %v235 = vlaneseq
        %v236 = vshrl.u32 %v235, 7
        %v237 = vsub.s32 2, %v236
        %v238 = vrot.slane %v225, %v237
        %v239 = vlaneseq
        %v240 = vshrl.u32 %v239, 7
        %v241 = vsub.s32 3, %v240
        %v242 = vrot.slane %v225, %v241
        %v247 = vld [vmem:[%s195] sm:$0xf]
        %v248 = vld [vmem:[%s195 + $0x4] sm:$0xf]
        %v249 = vld [vmem:[%s195 + $0x8] sm:$0xf]
        %v250 = vld [vmem:[%s195 + $0xc] sm:$0xf]
        %v251 = vunpack.c.l.bf16 %v247
        %v252 = vunpack.c.l.bf16 %v248
        %v253 = vunpack.c.l.bf16 %v249
        %v254 = vunpack.c.l.bf16 %v250
        %v259 = vcombine.high %v251, %v251
        %v261 = vunpack.c.l.s4 1983009808
        %v262 = vunpack.c.0.s8 %v261
        %v263 = vlaneseq
        %v264 = vshrl.u32 %v263, 7
        %v265 = vsub.s32 %v262, %v264
        %v266 = vrot.slane %v251, %v265
        %v268 = vunpack.c.l.s4 1983009808
        %v269 = vunpack.c.0.s8 %v268
        %v270 = vlaneseq
        %v271 = vshrl.u32 %v270, 7
        %v272 = vsub.s32 %v269, %v271
        %v273 = vrot.slane %v259, %v272
        %v274 = vcombine.high %v266, %v266
        %v275 = vcombine.high %v273, %v273
        %v276 = vcombine.high %v252, %v252
        %v278 = vunpack.c.l.s4 1983009808
        %v279 = vunpack.c.0.s8 %v278
        %v280 = vlaneseq
        %v281 = vshrl.u32 %v280, 7
        %v282 = vsub.s32 %v279, %v281
        %v283 = vrot.slane %v252, %v282
        %v285 = vunpack.c.l.s4 1983009808
        %v286 = vunpack.c.0.s8 %v285
        %v287 = vlaneseq
        %v288 = vshrl.u32 %v287, 7
        %v289 = vsub.s32 %v286, %v288
        %v290 = vrot.slane %v276, %v289
        %v291 = vcombine.high %v283, %v283
        %v292 = vcombine.high %v290, %v290
        %v293 = vcombine.high %v253, %v253
        %v295 = vunpack.c.l.s4 1983009808
        %v296 = vunpack.c.0.s8 %v295
        %v297 = vlaneseq
        %v298 = vshrl.u32 %v297, 7
        %v299 = vsub.s32 %v296, %v298
        %v300 = vrot.slane %v253, %v299
        %v302 = vunpack.c.l.s4 1983009808
        %v303 = vunpack.c.0.s8 %v302
        %v304 = vlaneseq
        %v305 = vshrl.u32 %v304, 7
        %v306 = vsub.s32 %v303, %v305
        %v307 = vrot.slane %v293, %v306
        %v308 = vcombine.high %v300, %v300
        %v309 = vcombine.high %v307, %v307
        %v310 = vcombine.high %v254, %v254
        %v312 = vunpack.c.l.s4 1983009808
        %v313 = vunpack.c.0.s8 %v312
        %v314 = vlaneseq
        %v315 = vshrl.u32 %v314, 7
        %v316 = vsub.s32 %v313, %v315
        %v317 = vrot.slane %v254, %v316
        %v319 = vunpack.c.l.s4 1983009808
        %v320 = vunpack.c.0.s8 %v319
        %v321 = vlaneseq
        %v322 = vshrl.u32 %v321, 7
        %v323 = vsub.s32 %v320, %v322
        %v324 = vrot.slane %v310, %v323
        %v325 = vcombine.high %v317, %v317
        %v326 = vcombine.high %v324, %v324
        %v343 = vrot.slane %v266, 7
        %v344 = vrot.slane %v343, 2
        %v345 = vrot.slane %v274, 7
        %v346 = vrot.slane %v345, 2
        %v347 = vrot.slane %v273, 7
        %v348 = vrot.slane %v347, 2
        %v349 = vrot.slane %v275, 7
        %v350 = vrot.slane %v349, 2
        %v351 = vrot.slane %v283, 7
        %v352 = vrot.slane %v351, 2
        %v353 = vrot.slane %v291, 7
        %v354 = vrot.slane %v353, 2
        %v355 = vrot.slane %v290, 7
        %v356 = vrot.slane %v355, 2
        %v357 = vrot.slane %v292, 7
        %v358 = vrot.slane %v357, 2
        %v359 = vrot.slane %v300, 7
        %v360 = vrot.slane %v359, 2
        %v361 = vrot.slane %v308, 7
        %v362 = vrot.slane %v361, 2
        %v363 = vrot.slane %v307, 7
        %v364 = vrot.slane %v363, 2
        %v365 = vrot.slane %v309, 7
        %v366 = vrot.slane %v365, 2
        %v367 = vrot.slane %v317, 7
        %v368 = vrot.slane %v367, 2
        %v369 = vrot.slane %v325, 7
        %v370 = vrot.slane %v369, 2
        %v371 = vrot.slane %v324, 7
        %v372 = vrot.slane %v371, 2
        %v373 = vrot.slane %v326, 7
        %v374 = vrot.slane %v373, 2
        %v391 = vadd.f32 %v266, %v344
        %v392 = vadd.f32 %v274, %v346
        %v393 = vadd.f32 %v273, %v348
        %v394 = vadd.f32 %v275, %v350
        %v395 = vadd.f32 %v283, %v352
        %v396 = vadd.f32 %v291, %v354
        %v397 = vadd.f32 %v290, %v356
        %v398 = vadd.f32 %v292, %v358
        %v399 = vadd.f32 %v300, %v360
        %v400 = vadd.f32 %v308, %v362
        %v401 = vadd.f32 %v307, %v364
        %v402 = vadd.f32 %v309, %v366
        %v403 = vadd.f32 %v317, %v368
        %v404 = vadd.f32 %v325, %v370
        %v405 = vadd.f32 %v324, %v372
        %v406 = vadd.f32 %v326, %v374
        %v407 = vmul.f32 %v391, 0.5
        %v408 = vmul.f32 %v392, 0.5
        %v409 = vmul.f32 %v393, 0.5
        %v410 = vmul.f32 %v394, 0.5
        %v411 = vmul.f32 %v395, 0.5
        %v412 = vmul.f32 %v396, 0.5
        %v413 = vmul.f32 %v397, 0.5
        %v414 = vmul.f32 %v398, 0.5
        %v415 = vmul.f32 %v399, 0.5
        %v416 = vmul.f32 %v400, 0.5
        %v417 = vmul.f32 %v401, 0.5
        %v418 = vmul.f32 %v402, 0.5
        %v419 = vmul.f32 %v403, 0.5
        %v420 = vmul.f32 %v404, 0.5
        %v421 = vmul.f32 %v405, 0.5
        %v422 = vmul.f32 %v406, 0.5
        %v423 = vadd.f32 %v407, %v408
        %v424 = vadd.f32 %v411, %v412
        %v425 = vadd.f32 %v415, %v416
        %v426 = vadd.f32 %v419, %v420
        %v427 = vadd.f32 %v423, %v409
        %v428 = vadd.f32 %v424, %v413
        %v429 = vadd.f32 %v425, %v417
        %v430 = vadd.f32 %v426, %v421
        %v431 = vadd.f32 %v427, %v410
        %v432 = vadd.f32 %v428, %v414
        %v433 = vadd.f32 %v429, %v418
        %v434 = vadd.f32 %v430, %v422
        %v435 = vmul.f32 %v431, 0.25
        %v436 = vmul.f32 %v432, 0.25
        %v437 = vmul.f32 %v433, 0.25
        %v438 = vmul.f32 %v434, 0.25
        %v439 = vpack.c.bf16 %v435, %v435
        %v440 = vpack.c.bf16 %v436, %v436
        %v441 = vpack.c.bf16 %v437, %v437
        %v442 = vpack.c.bf16 %v438, %v438
        %v443 = vld [vmem:[#allocation5] sm:$0xff]
        %v444 = vld [vmem:[#allocation5 + $0x8] sm:$0xff]
        %v445 = vld [vmem:[#allocation5 + $0x10] sm:$0xff]
        %v446 = vld [vmem:[#allocation5 + $0x18] sm:$0xff]
        %v447 = vld [vmem:[#allocation5 + $0x20] sm:$0xff]
        %v448 = vld [vmem:[#allocation5 + $0x28] sm:$0xff]
        %v449 = vld [vmem:[#allocation5 + $0x30] sm:$0xff]
        %v450 = vld [vmem:[#allocation5 + $0x38] sm:$0xff]
        %v451 = vld [vmem:[#allocation5 + $0x40] sm:$0xff]
        %v452 = vld [vmem:[#allocation5 + $0x48] sm:$0xff]
        %v453 = vld [vmem:[#allocation5 + $0x50] sm:$0xff]
        %v454 = vld [vmem:[#allocation5 + $0x58] sm:$0xff]
        %v455 = vld [vmem:[#allocation5 + $0x60] sm:$0xff]
        %v456 = vld [vmem:[#allocation5 + $0x68] sm:$0xff]
        %v457 = vld [vmem:[#allocation5 + $0x70] sm:$0xff]
        %v458 = vld [vmem:[#allocation5 + $0x78] sm:$0xff]
        %v459 = vld [vmem:[#allocation5 + $0x80] sm:$0xff]
        %v460 = vld [vmem:[#allocation5 + $0x88] sm:$0xff]
        %v461 = vld [vmem:[#allocation5 + $0x90] sm:$0xff]
        %v462 = vld [vmem:[#allocation5 + $0x98] sm:$0xff]
        %v463 = vld [vmem:[#allocation5 + $0xa0] sm:$0xff]
        %v464 = vld [vmem:[#allocation5 + $0xa8] sm:$0xff]
        %v465 = vld [vmem:[#allocation5 + $0xb0] sm:$0xff]
        %v466 = vld [vmem:[#allocation5 + $0xb8] sm:$0xff]
        %v471 = vunpack.c.l.b16 %v439
        %v472 = vunpack.c.l.b16 %v440
        %v473 = vunpack.c.l.b16 %v441
        %v474 = vunpack.c.l.b16 %v442
        %v475 = vrot.slane %v472, 7
        %vm476 = vcmask 1041409
        %v477 = vsel %vm476, %v475, %v471
        %v478 = vrot.slane %v473, 6
        %vm479 = vcmask 1042434
        %v480 = vsel %vm479, %v478, %v477
        %v481 = vrot.slane %v474, 5
        %vm482 = vcmask 1043459
        %v483 = vsel %vm482, %v481, %v480
        %v484 = vpack.c.b16 %v483, %v483
        %v509 = vunpack.c.l.b16 %v443
        %v510 = vunpack.c.h.b16 %v443
        %v511 = vunpack.c.l.b16 %v444
        %v512 = vunpack.c.h.b16 %v444
        %v513 = vunpack.c.l.b16 %v445
        %v514 = vunpack.c.h.b16 %v445
        %v515 = vunpack.c.l.b16 %v446
        %v516 = vunpack.c.h.b16 %v446
        %v517 = vunpack.c.l.b16 %v447
        %v518 = vunpack.c.h.b16 %v447
        %v519 = vunpack.c.l.b16 %v448
        %v520 = vunpack.c.h.b16 %v448
        %v521 = vunpack.c.l.b16 %v449
        %v522 = vunpack.c.h.b16 %v449
        %v523 = vunpack.c.l.b16 %v450
        %v524 = vunpack.c.h.b16 %v450
        %v525 = vunpack.c.l.b16 %v451
        %v526 = vunpack.c.h.b16 %v451
        %v527 = vunpack.c.l.b16 %v452
        %v528 = vunpack.c.h.b16 %v452
        %v529 = vunpack.c.l.b16 %v453
        %v530 = vunpack.c.h.b16 %v453
        %v531 = vunpack.c.l.b16 %v454
        %v532 = vunpack.c.h.b16 %v454
        %v533 = vunpack.c.l.b16 %v455
        %v534 = vunpack.c.h.b16 %v455
        %v535 = vunpack.c.l.b16 %v456
        %v536 = vunpack.c.h.b16 %v456
        %v537 = vunpack.c.l.b16 %v457
        %v538 = vunpack.c.h.b16 %v457
        %v539 = vunpack.c.l.b16 %v458
        %v540 = vunpack.c.h.b16 %v458
        %v541 = vunpack.c.l.b16 %v459
        %v542 = vunpack.c.h.b16 %v459
        %v543 = vunpack.c.l.b16 %v460
        %v544 = vunpack.c.h.b16 %v460
        %v545 = vunpack.c.l.b16 %v461
        %v546 = vunpack.c.h.b16 %v461
        %v547 = vunpack.c.l.b16 %v462
        %v548 = vunpack.c.h.b16 %v462
        %v549 = vunpack.c.l.b16 %v463
        %v550 = vunpack.c.h.b16 %v463
        %v551 = vunpack.c.l.b16 %v464
        %v552 = vunpack.c.h.b16 %v464
        %v553 = vunpack.c.l.b16 %v465
        %v554 = vunpack.c.h.b16 %v465
        %v555 = vunpack.c.l.b16 %v466
        %v556 = vunpack.c.h.b16 %v466
        %v557 = vpack.c.b16 %v513, %v509
        %v558 = vpack.c.b16 %v514, %v510
        %v559 = vpack.c.b16 %v515, %v511
        %v560 = vpack.c.b16 %v516, %v512
        %v561 = vpack.c.b16 %v521, %v517
        %v562 = vpack.c.b16 %v522, %v518
        %v563 = vpack.c.b16 %v523, %v519
        %v564 = vpack.c.b16 %v524, %v520
        %v565 = vpack.c.b16 %v529, %v525
        %v566 = vpack.c.b16 %v530, %v526
        %v567 = vpack.c.b16 %v531, %v527
        %v568 = vpack.c.b16 %v532, %v528
        %v569 = vpack.c.b16 %v537, %v533
        %v570 = vpack.c.b16 %v538, %v534
        %v571 = vpack.c.b16 %v539, %v535
        %v572 = vpack.c.b16 %v540, %v536
        %v573 = vpack.c.b16 %v545, %v541
        %v574 = vpack.c.b16 %v546, %v542
        %v575 = vpack.c.b16 %v547, %v543
        %v576 = vpack.c.b16 %v548, %v544
        %v577 = vpack.c.b16 %v553, %v549
        %v578 = vpack.c.b16 %v554, %v550
        %v579 = vpack.c.b16 %v555, %v551
        %v580 = vpack.c.b16 %v556, %v552
        %vm605 = vcmask 785408
        %v607 = vsel %vm605, %v484, 0
        %609 = vmatprep.subr.bf16.mxu0 %v558
        %610 = vmatpush1.bf16.msra.mxu0 %v557
        %611 = vmatprep.subr.bf16.mxu0 %v562
        %612 = vmatpush1.bf16.msra.mxu0 %v561
        %613 = vmatprep.subr.bf16.mxu0 %v566
        %614 = vmatpush1.bf16.msra.mxu0 %v565
        %615 = vmatprep.subr.bf16.mxu0 %v570
        %616 = vmatpush1.bf16.msra.mxu0 %v569
        %617 = vmatprep.subr.bf16.mxu0 %v574
        %618 = vmatpush1.bf16.msra.mxu0 %v573
        %619 = vmatprep.subr.bf16.mxu0 %v578
        %620 = vmatpush1.bf16.msra.mxu0 %v577
        %621 = vmatprep.subr.bf16.mxu0 0
        %622 = vmatpush1.bf16.msra.mxu0 0
        %623 = vmatprep.subr.bf16.mxu0 0
        %624 = vmatpush1.bf16.msra.mxu0 0
        %625 = vmatprep.subr.bf16.mxu0 0
        %626 = vmatpush1.bf16.msra.mxu0 0
        %627 = vmatprep.subr.bf16.mxu0 0
        %628 = vmatpush1.bf16.msra.mxu0 0
        %629 = vmatprep.subr.bf16.mxu0 0
        %630 = vmatpush1.bf16.msra.mxu0 0
        %631 = vmatprep.subr.bf16.mxu0 0
        %632 = vmatpush1.bf16.msra.mxu0 0
        %633 = vmatprep.subr.bf16.mxu0 0
        %634 = vmatpush1.bf16.msra.mxu0 0
        %635 = vmatprep.subr.bf16.mxu0 0
        %636 = vmatpush1.bf16.msra.mxu0 0
        %637 = vmatprep.subr.bf16.mxu0 0
        %638 = vmatpush1.bf16.msra.mxu0 0
        %639 = vmatprep.subr.bf16.mxu0 0
        %640 = vmatpush1.bf16.msra.mxu0 0
        %641 = vmatprep.mubr.bf16.mxu0 0
        %642 = vmatmul.mubr.bf16.gmra.mrb[0].mxu0 %v607
        %v643 = vpop.f32.mrb[0].mxu0
        %v644 = vadd.f32 0.0, %v643
        %v645 = vpop.f32.mrb[0].mxu0
        %v646 = vadd.f32 0.0, %v645
        %v647 = vpop.f32.mrb[0].mxu0
        %v648 = vpop.f32.mrb[0].mxu0
        %649 = vdwg.mxu0
        %650 = vmatprep.subr.bf16.mxu0 %v560
        %651 = vmatpush1.bf16.msra.mxu0 %v559
        %652 = vmatprep.subr.bf16.mxu0 %v564
        %653 = vmatpush1.bf16.msra.mxu0 %v563
        %654 = vmatprep.subr.bf16.mxu0 %v568
        %655 = vmatpush1.bf16.msra.mxu0 %v567
        %656 = vmatprep.subr.bf16.mxu0 %v572
        %657 = vmatpush1.bf16.msra.mxu0 %v571
        %658 = vmatprep.subr.bf16.mxu0 %v576
        %659 = vmatpush1.bf16.msra.mxu0 %v575
        %660 = vmatprep.subr.bf16.mxu0 %v580
        %661 = vmatpush1.bf16.msra.mxu0 %v579
        %662 = vmatprep.subr.bf16.mxu0 0
        %663 = vmatpush1.bf16.msra.mxu0 0
        %664 = vmatprep.subr.bf16.mxu0 0
        %665 = vmatpush1.bf16.msra.mxu0 0
        %666 = vmatprep.subr.bf16.mxu0 0
        %667 = vmatpush1.bf16.msra.mxu0 0
        %668 = vmatprep.subr.bf16.mxu0 0
        %669 = vmatpush1.bf16.msra.mxu0 0
        %670 = vmatprep.subr.bf16.mxu0 0
        %671 = vmatpush1.bf16.msra.mxu0 0
        %672 = vmatprep.subr.bf16.mxu0 0
        %673 = vmatpush1.bf16.msra.mxu0 0
        %674 = vmatprep.subr.bf16.mxu0 0
        %675 = vmatpush1.bf16.msra.mxu0 0
        %676 = vmatprep.subr.bf16.mxu0 0
        %677 = vmatpush1.bf16.msra.mxu0 0
        %678 = vmatprep.subr.bf16.mxu0 0
        %679 = vmatpush1.bf16.msra.mxu0 0
        %680 = vmatprep.subr.bf16.mxu0 0
        %681 = vmatpush1.bf16.msra.mxu0 0
        %682 = vmatprep.mubr.bf16.mxu0 0
        %683 = vmatmul.mubr.bf16.gmra.mrb[0].mxu0 %v607
        %v684 = vpop.f32.mrb[0].mxu0
        %v685 = vadd.f32 0.0, %v684
        %v686 = vpop.f32.mrb[0].mxu0
        %v687 = vadd.f32 0.0, %v686
        %v688 = vpop.f32.mrb[0].mxu0
        %v689 = vpop.f32.mrb[0].mxu0
        %690 = vdwg.mxu0
        %v695 = vcombine.low %v644, %v646
        %v696 = vcombine.low %v685, %v687
        %v698 = vunpack.c.l.s4 1966171168
        %v699 = vunpack.c.0.s8 %v698
        %v700 = vlaneseq
        %v701 = vshrl.u32 %v700, 7
        %v702 = vsub.s32 %v699, %v701
        %v703 = vrot.slane %v695, %v702
        %v705 = vunpack.c.l.s4 1966171168
        %v706 = vunpack.c.0.s8 %v705
        %v707 = vlaneseq
        %v708 = vshrl.u32 %v707, 7
        %v709 = vsub.s32 %v706, %v708
        %v710 = vrot.slane %v696, %v709
        %v711 = vcombine.low %v703, %v710
        %v712 = vcombine.high %v703, %v710
        %v714 = vunpack.c.l.s4 1966171168
        %v715 = vunpack.c.0.s8 %v714
        %v716 = vlaneseq
        %v717 = vshrl.u32 %v716, 7
        %v718 = vsub.s32 %v715, %v717
        %v719 = vrot.slane %v711, %v718
        %v721 = vunpack.c.l.s4 1966171168
        %v722 = vunpack.c.0.s8 %v721
        %v723 = vlaneseq
        %v724 = vshrl.u32 %v723, 7
        %v725 = vsub.s32 %v722, %v724
        %v726 = vrot.slane %v712, %v725
        %v727 = vcombine.high %v719, %v719
        %v728 = vcombine.high %v726, %v726
        %v729 = vlaneseq
        %v730 = vshrl.u32 %v729, 7
        %v731 = vsub.s32 0, %v730
        %v732 = vrot.slane %v719, %v731
        %v733 = vlaneseq
        %v734 = vshrl.u32 %v733, 7
        %v735 = vsub.s32 1, %v734
        %v736 = vrot.slane %v719, %v735
        %v737 = vlaneseq
        %v738 = vshrl.u32 %v737, 7
        %v739 = vsub.s32 2, %v738
        %v740 = vrot.slane %v719, %v739
        %v741 = vlaneseq
        %v742 = vshrl.u32 %v741, 7
        %v743 = vsub.s32 3, %v742
        %v744 = vrot.slane %v719, %v743
        %v745 = vlaneseq
        %v746 = vshrl.u32 %v745, 7
        %v747 = vsub.s32 0, %v746
        %v748 = vrot.slane %v726, %v747
        %v749 = vlaneseq
        %v750 = vshrl.u32 %v749, 7
        %v751 = vsub.s32 1, %v750
        %v752 = vrot.slane %v726, %v751
        %v753 = vlaneseq
        %v754 = vshrl.u32 %v753, 7
        %v755 = vsub.s32 2, %v754
        %v756 = vrot.slane %v726, %v755
        %v757 = vlaneseq
        %v758 = vshrl.u32 %v757, 7
        %v759 = vsub.s32 3, %v758
        %v760 = vrot.slane %v726, %v759
        %v761 = vlaneseq
        %v762 = vshrl.u32 %v761, 7
        %v763 = vsub.s32 0, %v762
        %v764 = vrot.slane %v727, %v763
        %v765 = vlaneseq
        %v766 = vshrl.u32 %v765, 7
        %v767 = vsub.s32 1, %v766
        %v768 = vrot.slane %v727, %v767
        %v769 = vlaneseq
        %v770 = vshrl.u32 %v769, 7
        %v771 = vsub.s32 2, %v770
        %v772 = vrot.slane %v727, %v771
        %v773 = vlaneseq
        %v774 = vshrl.u32 %v773, 7
        %v775 = vsub.s32 3, %v774
        %v776 = vrot.slane %v727, %v775
        %v777 = vlaneseq
        %v778 = vshrl.u32 %v777, 7
        %v779 = vsub.s32 0, %v778
        %v780 = vrot.slane %v728, %v779
        %v781 = vlaneseq
        %v782 = vshrl.u32 %v781, 7
        %v783 = vsub.s32 1, %v782
        %v784 = vrot.slane %v728, %v783
        %v785 = vlaneseq
        %v786 = vshrl.u32 %v785, 7
        %v787 = vsub.s32 2, %v786
        %v788 = vrot.slane %v728, %v787
        %v789 = vlaneseq
        %v790 = vshrl.u32 %v789, 7
        %v791 = vsub.s32 3, %v790
        %v792 = vrot.slane %v728, %v791
        %v793 = vcombine.low %v732, %v736
        %v794 = vcombine.low %v740, %v744
        %v795 = vcombine.low %v748, %v752
        %v796 = vcombine.low %v756, %v760
        %v797 = vcombine.low %v764, %v768
        %v798 = vcombine.low %v772, %v776
        %v799 = vcombine.low %v780, %v784
        %v800 = vcombine.low %v788, %v792
        %v801 = vcombine.low %v793, %v795
        %v802 = vcombine.high %v793, %v795
        %v803 = vcombine.low %v794, %v796
        %v804 = vcombine.high %v794, %v796
        %v805 = vcombine.low %v797, %v799
        %v806 = vcombine.high %v797, %v799
        %v807 = vcombine.low %v798, %v800
        %v808 = vcombine.high %v798, %v800
        %v817 = vadd.f32 %v230, %v801
        %v818 = vadd.f32 %v234, %v802
        %v819 = vadd.f32 %v238, %v803
        %v820 = vadd.f32 %v242, %v804
        %v821 = vadd.f32 %v230, %v805
        %v822 = vadd.f32 %v234, %v806
        %v823 = vadd.f32 %v238, %v807
        %v824 = vadd.f32 %v242, %v808
        %v825 = vadd.f32 %v409, %v410
        %v826 = vadd.f32 %v413, %v414
        %v827 = vadd.f32 %v417, %v418
        %v828 = vadd.f32 %v421, %v422
        %v829 = vmul.f32 %v423, 0.5
        %v830 = vmul.f32 %v825, 0.5
        %v831 = vmul.f32 %v424, 0.5
        %v832 = vmul.f32 %v826, 0.5
        %v833 = vmul.f32 %v425, 0.5
        %v834 = vmul.f32 %v827, 0.5
        %v835 = vmul.f32 %v426, 0.5
        %v836 = vmul.f32 %v828, 0.5
        %v837 = vpack.c.bf16 %v829, %v829
        %v838 = vpack.c.bf16 %v830, %v830
        %v839 = vpack.c.bf16 %v831, %v831
        %v840 = vpack.c.bf16 %v832, %v832
        %v841 = vpack.c.bf16 %v833, %v833
        %v842 = vpack.c.bf16 %v834, %v834
        %v843 = vpack.c.bf16 %v835, %v835
        %v844 = vpack.c.bf16 %v836, %v836
        %s845 = scalar_lea.vmem [#allocation5], 192
        %v846 = vld [vmem:[%s845] sm:$0xff]
        %v847 = vld [vmem:[%s845 + $0x8] sm:$0xff]
        %v848 = vld [vmem:[%s845 + $0x10] sm:$0xff]
        %v849 = vld [vmem:[%s845 + $0x18] sm:$0xff]
        %v850 = vld [vmem:[%s845 + $0x20] sm:$0xff]
        %v851 = vld [vmem:[%s845 + $0x28] sm:$0xff]
        %v852 = vld [vmem:[%s845 + $0x30] sm:$0xff]
        %v853 = vld [vmem:[%s845 + $0x38] sm:$0xff]
        %v854 = vld [vmem:[%s845 + $0x40] sm:$0xff]
        %v855 = vld [vmem:[%s845 + $0x48] sm:$0xff]
        %v856 = vld [vmem:[%s845 + $0x50] sm:$0xff]
        %v857 = vld [vmem:[%s845 + $0x58] sm:$0xff]
        %v858 = vld [vmem:[%s845 + $0x60] sm:$0xff]
        %v859 = vld [vmem:[%s845 + $0x68] sm:$0xff]
        %v860 = vld [vmem:[%s845 + $0x70] sm:$0xff]
        %v861 = vld [vmem:[%s845 + $0x78] sm:$0xff]
        %v862 = vld [vmem:[%s845 + $0x80] sm:$0xff]
        %v863 = vld [vmem:[%s845 + $0x88] sm:$0xff]
        %v864 = vld [vmem:[%s845 + $0x90] sm:$0xff]
        %v865 = vld [vmem:[%s845 + $0x98] sm:$0xff]
        %v866 = vld [vmem:[%s845 + $0xa0] sm:$0xff]
        %v867 = vld [vmem:[%s845 + $0xa8] sm:$0xff]
        %v868 = vld [vmem:[%s845 + $0xb0] sm:$0xff]
        %v869 = vld [vmem:[%s845 + $0xb8] sm:$0xff]
        %v878 = vunpack.c.l.b16 %v837
        %v879 = vunpack.c.l.b16 %v838
        %v880 = vunpack.c.l.b16 %v839
        %v881 = vunpack.c.l.b16 %v840
        %v882 = vunpack.c.l.b16 %v841
        %v883 = vunpack.c.l.b16 %v842
        %v884 = vunpack.c.l.b16 %v843
        %v885 = vunpack.c.l.b16 %v844
        %v886 = vrot.slane %v879, 7
        %v887 = vsel %vm476, %v886, %v878
        %v888 = vrot.slane %v880, 6
        %v889 = vsel %vm479, %v888, %v887
        %v890 = vrot.slane %v881, 5
        %v891 = vsel %vm482, %v890, %v889
        %v892 = vrot.slane %v882, 4
        %vm893 = vcmask 1044484
        %v894 = vsel %vm893, %v892, %v891
        %v895 = vrot.slane %v883, 3
        %vm896 = vcmask 1045509
        %v897 = vsel %vm896, %v895, %v894
        %v898 = vrot.slane %v884, 2
        %vm899 = vcmask 1046534
        %v900 = vsel %vm899, %v898, %v897
        %v901 = vrot.slane %v885, 1
        %vm902 = vcmask 1047559
        %v903 = vsel %vm902, %v901, %v900
        %v904 = vpack.c.b16 %v903, %v903
        %v929 = vunpack.c.l.b16 %v846
        %v930 = vunpack.c.h.b16 %v846
        %v931 = vunpack.c.l.b16 %v847
        %v932 = vunpack.c.h.b16 %v847
        %v933 = vunpack.c.l.b16 %v848
        %v934 = vunpack.c.h.b16 %v848
        %v935 = vunpack.c.l.b16 %v849
        %v936 = vunpack.c.h.b16 %v849
        %v937 = vunpack.c.l.b16 %v850
        %v938 = vunpack.c.h.b16 %v850
        %v939 = vunpack.c.l.b16 %v851
        %v940 = vunpack.c.h.b16 %v851
        %v941 = vunpack.c.l.b16 %v852
        %v942 = vunpack.c.h.b16 %v852
        %v943 = vunpack.c.l.b16 %v853
        %v944 = vunpack.c.h.b16 %v853
        %v945 = vunpack.c.l.b16 %v854
        %v946 = vunpack.c.h.b16 %v854
        %v947 = vunpack.c.l.b16 %v855
        %v948 = vunpack.c.h.b16 %v855
        %v949 = vunpack.c.l.b16 %v856
        %v950 = vunpack.c.h.b16 %v856
        %v951 = vunpack.c.l.b16 %v857
        %v952 = vunpack.c.h.b16 %v857
        %v953 = vunpack.c.l.b16 %v858
        %v954 = vunpack.c.h.b16 %v858
        %v955 = vunpack.c.l.b16 %v859
        %v956 = vunpack.c.h.b16 %v859
        %v957 = vunpack.c.l.b16 %v860
        %v958 = vunpack.c.h.b16 %v860
        %v959 = vunpack.c.l.b16 %v861
        %v960 = vunpack.c.h.b16 %v861
        %v961 = vunpack.c.l.b16 %v862
        %v962 = vunpack.c.h.b16 %v862
        %v963 = vunpack.c.l.b16 %v863
        %v964 = vunpack.c.h.b16 %v863
        %v965 = vunpack.c.l.b16 %v864
        %v966 = vunpack.c.h.b16 %v864
        %v967 = vunpack.c.l.b16 %v865
        %v968 = vunpack.c.h.b16 %v865
        %v969 = vunpack.c.l.b16 %v866
        %v970 = vunpack.c.h.b16 %v866
        %v971 = vunpack.c.l.b16 %v867
        %v972 = vunpack.c.h.b16 %v867
        %v973 = vunpack.c.l.b16 %v868
        %v974 = vunpack.c.h.b16 %v868
        %v975 = vunpack.c.l.b16 %v869
        %v976 = vunpack.c.h.b16 %v869
        %v977 = vpack.c.b16 %v933, %v929
        %v978 = vpack.c.b16 %v934, %v930
        %v979 = vpack.c.b16 %v935, %v931
        %v980 = vpack.c.b16 %v936, %v932
        %v981 = vpack.c.b16 %v941, %v937
        %v982 = vpack.c.b16 %v942, %v938
        %v983 = vpack.c.b16 %v943, %v939
        %v984 = vpack.c.b16 %v944, %v940
        %v985 = vpack.c.b16 %v949, %v945
        %v986 = vpack.c.b16 %v950, %v946
        %v987 = vpack.c.b16 %v951, %v947
        %v988 = vpack.c.b16 %v952, %v948
        %v989 = vpack.c.b16 %v957, %v953
        %v990 = vpack.c.b16 %v958, %v954
        %v991 = vpack.c.b16 %v959, %v955
        %v992 = vpack.c.b16 %v960, %v956
        %v993 = vpack.c.b16 %v965, %v961
        %v994 = vpack.c.b16 %v966, %v962
        %v995 = vpack.c.b16 %v967, %v963
        %v996 = vpack.c.b16 %v968, %v964
        %v997 = vpack.c.b16 %v973, %v969
        %v998 = vpack.c.b16 %v974, %v970
        %v999 = vpack.c.b16 %v975, %v971
        %v1000 = vpack.c.b16 %v976, %v972
        %v1026 = vsel %vm605, %v904, 0
        %1028 = vmatprep.subr.bf16.mxu0 %v978
        %1029 = vmatpush1.bf16.msra.mxu0 %v977
        %1030 = vmatprep.subr.bf16.mxu0 %v982
        %1031 = vmatpush1.bf16.msra.mxu0 %v981
        %1032 = vmatprep.subr.bf16.mxu0 %v986
        %1033 = vmatpush1.bf16.msra.mxu0 %v985
        %1034 = vmatprep.subr.bf16.mxu0 %v990
        %1035 = vmatpush1.bf16.msra.mxu0 %v989
        %1036 = vmatprep.subr.bf16.mxu0 %v994
        %1037 = vmatpush1.bf16.msra.mxu0 %v993
        %1038 = vmatprep.subr.bf16.mxu0 %v998
        %1039 = vmatpush1.bf16.msra.mxu0 %v997
        %1040 = vmatprep.subr.bf16.mxu0 0
        %1041 = vmatpush1.bf16.msra.mxu0 0
        %1042 = vmatprep.subr.bf16.mxu0 0
        %1043 = vmatpush1.bf16.msra.mxu0 0
        %1044 = vmatprep.subr.bf16.mxu0 0
        %1045 = vmatpush1.bf16.msra.mxu0 0
        %1046 = vmatprep.subr.bf16.mxu0 0
        %1047 = vmatpush1.bf16.msra.mxu0 0
        %1048 = vmatprep.subr.bf16.mxu0 0
        %1049 = vmatpush1.bf16.msra.mxu0 0
        %1050 = vmatprep.subr.bf16.mxu0 0
        %1051 = vmatpush1.bf16.msra.mxu0 0
        %1052 = vmatprep.subr.bf16.mxu0 0
        %1053 = vmatpush1.bf16.msra.mxu0 0
        %1054 = vmatprep.subr.bf16.mxu0 0
        %1055 = vmatpush1.bf16.msra.mxu0 0
        %1056 = vmatprep.subr.bf16.mxu0 0
        %1057 = vmatpush1.bf16.msra.mxu0 0
        %1058 = vmatprep.subr.bf16.mxu0 0
        %1059 = vmatpush1.bf16.msra.mxu0 0
        %1060 = vmatprep.mubr.bf16.mxu0 0
        %1061 = vmatmul.mubr.bf16.gmra.mrb[0].mxu0 %v1026
        %v1062 = vpop.f32.mrb[0].mxu0
        %v1063 = vadd.f32 0.0, %v1062
        %v1064 = vpop.f32.mrb[0].mxu0
        %v1065 = vadd.f32 0.0, %v1064
        %v1066 = vpop.f32.mrb[0].mxu0
        %v1067 = vpop.f32.mrb[0].mxu0
        %1068 = vdwg.mxu0
        %1069 = vmatprep.subr.bf16.mxu0 %v980
        %1070 = vmatpush1.bf16.msra.mxu0 %v979
        %1071 = vmatprep.subr.bf16.mxu0 %v984
        %1072 = vmatpush1.bf16.msra.mxu0 %v983
        %1073 = vmatprep.subr.bf16.mxu0 %v988
        %1074 = vmatpush1.bf16.msra.mxu0 %v987
        %1075 = vmatprep.subr.bf16.mxu0 %v992
        %1076 = vmatpush1.bf16.msra.mxu0 %v991
        %1077 = vmatprep.subr.bf16.mxu0 %v996
        %1078 = vmatpush1.bf16.msra.mxu0 %v995
        %1079 = vmatprep.subr.bf16.mxu0 %v1000
        %1080 = vmatpush1.bf16.msra.mxu0 %v999
        %1081 = vmatprep.subr.bf16.mxu0 0
        %1082 = vmatpush1.bf16.msra.mxu0 0
        %1083 = vmatprep.subr.bf16.mxu0 0
        %1084 = vmatpush1.bf16.msra.mxu0 0
        %1085 = vmatprep.subr.bf16.mxu0 0
        %1086 = vmatpush1.bf16.msra.mxu0 0
        %1087 = vmatprep.subr.bf16.mxu0 0
        %1088 = vmatpush1.bf16.msra.mxu0 0
        %1089 = vmatprep.subr.bf16.mxu0 0
        %1090 = vmatpush1.bf16.msra.mxu0 0
        %1091 = vmatprep.subr.bf16.mxu0 0
        %1092 = vmatpush1.bf16.msra.mxu0 0
        %1093 = vmatprep.subr.bf16.mxu0 0
        %1094 = vmatpush1.bf16.msra.mxu0 0
        %1095 = vmatprep.subr.bf16.mxu0 0
        %1096 = vmatpush1.bf16.msra.mxu0 0
        %1097 = vmatprep.subr.bf16.mxu0 0
        %1098 = vmatpush1.bf16.msra.mxu0 0
        %1099 = vmatprep.subr.bf16.mxu0 0
        %1100 = vmatpush1.bf16.msra.mxu0 0
        %1101 = vmatprep.mubr.bf16.mxu0 0
        %1102 = vmatmul.mubr.bf16.gmra.mrb[0].mxu0 %v1026
        %v1103 = vpop.f32.mrb[0].mxu0
        %v1104 = vadd.f32 0.0, %v1103
        %v1105 = vpop.f32.mrb[0].mxu0
        %v1106 = vadd.f32 0.0, %v1105
        %v1107 = vpop.f32.mrb[0].mxu0
        %v1108 = vpop.f32.mrb[0].mxu0
        %1109 = vdwg.mxu0
        %v1114 = vcombine.low %v1063, %v1065
        %v1115 = vcombine.high %v1063, %v1065
        %v1116 = vcombine.low %v1104, %v1106
        %v1117 = vcombine.high %v1104, %v1106
        %v1119 = vunpack.c.l.s4 1966171168
        %v1120 = vunpack.c.0.s8 %v1119
        %v1121 = vlaneseq
        %v1122 = vshrl.u32 %v1121, 7
        %v1123 = vsub.s32 %v1120, %v1122
        %v1124 = vrot.slane %v1114, %v1123
        %v1126 = vunpack.c.l.s4 1966171168
        %v1127 = vunpack.c.0.s8 %v1126
        %v1128 = vlaneseq
        %v1129 = vshrl.u32 %v1128, 7
        %v1130 = vsub.s32 %v1127, %v1129
        %v1131 = vrot.slane %v1115, %v1130
        %v1133 = vunpack.c.l.s4 1966171168
        %v1134 = vunpack.c.0.s8 %v1133
        %v1135 = vlaneseq
        %v1136 = vshrl.u32 %v1135, 7
        %v1137 = vsub.s32 %v1134, %v1136
        %v1138 = vrot.slane %v1116, %v1137
        %v1140 = vunpack.c.l.s4 1966171168
        %v1141 = vunpack.c.0.s8 %v1140
        %v1142 = vlaneseq
        %v1143 = vshrl.u32 %v1142, 7
        %v1144 = vsub.s32 %v1141, %v1143
        %v1145 = vrot.slane %v1117, %v1144
        %v1146 = vcombine.low %v1124, %v1138
        %v1147 = vcombine.high %v1124, %v1138
        %v1148 = vcombine.low %v1131, %v1145
        %v1149 = vcombine.high %v1131, %v1145
        %v1151 = vunpack.c.l.s4 1966171168
        %v1152 = vunpack.c.0.s8 %v1151
        %v1153 = vlaneseq
        %v1154 = vshrl.u32 %v1153, 7
        %v1155 = vsub.s32 %v1152, %v1154
        %v1156 = vrot.slane %v1146, %v1155
        %v1158 = vunpack.c.l.s4 1966171168
        %v1159 = vunpack.c.0.s8 %v1158
        %v1160 = vlaneseq
        %v1161 = vshrl.u32 %v1160, 7
        %v1162 = vsub.s32 %v1159, %v1161
        %v1163 = vrot.slane %v1148, %v1162
        %v1165 = vunpack.c.l.s4 1966171168
        %v1166 = vunpack.c.0.s8 %v1165
        %v1167 = vlaneseq
        %v1168 = vshrl.u32 %v1167, 7
        %v1169 = vsub.s32 %v1166, %v1168
        %v1170 = vrot.slane %v1147, %v1169
        %v1172 = vunpack.c.l.s4 1966171168
        %v1173 = vunpack.c.0.s8 %v1172
        %v1174 = vlaneseq
        %v1175 = vshrl.u32 %v1174, 7
        %v1176 = vsub.s32 %v1173, %v1175
        %v1177 = vrot.slane %v1149, %v1176
        %v1178 = vcombine.high %v1156, %v1156
        %v1179 = vcombine.high %v1163, %v1163
        %v1180 = vcombine.high %v1170, %v1170
        %v1181 = vcombine.high %v1177, %v1177
        %v1182 = vlaneseq
        %v1183 = vshrl.u32 %v1182, 7
        %v1184 = vsub.s32 0, %v1183
        %v1185 = vrot.slane %v1156, %v1184
        %v1186 = vlaneseq
        %v1187 = vshrl.u32 %v1186, 7
        %v1188 = vsub.s32 1, %v1187
        %v1189 = vrot.slane %v1156, %v1188
        %v1190 = vlaneseq
        %v1191 = vshrl.u32 %v1190, 7
        %v1192 = vsub.s32 2, %v1191
        %v1193 = vrot.slane %v1156, %v1192
        %v1194 = vlaneseq
        %v1195 = vshrl.u32 %v1194, 7
        %v1196 = vsub.s32 3, %v1195
        %v1197 = vrot.slane %v1156, %v1196
        %v1198 = vlaneseq
        %v1199 = vshrl.u32 %v1198, 7
        %v1200 = vsub.s32 0, %v1199
        %v1201 = vrot.slane %v1170, %v1200
        %v1202 = vlaneseq
        %v1203 = vshrl.u32 %v1202, 7
        %v1204 = vsub.s32 1, %v1203
        %v1205 = vrot.slane %v1170, %v1204
        %v1206 = vlaneseq
        %v1207 = vshrl.u32 %v1206, 7
        %v1208 = vsub.s32 2, %v1207
        %v1209 = vrot.slane %v1170, %v1208
        %v1210 = vlaneseq
        %v1211 = vshrl.u32 %v1210, 7
        %v1212 = vsub.s32 3, %v1211
        %v1213 = vrot.slane %v1170, %v1212
        %v1214 = vlaneseq
        %v1215 = vshrl.u32 %v1214, 7
        %v1216 = vsub.s32 0, %v1215
        %v1217 = vrot.slane %v1178, %v1216
        %v1218 = vlaneseq
        %v1219 = vshrl.u32 %v1218, 7
        %v1220 = vsub.s32 1, %v1219
        %v1221 = vrot.slane %v1178, %v1220
        %v1222 = vlaneseq
        %v1223 = vshrl.u32 %v1222, 7
        %v1224 = vsub.s32 2, %v1223
        %v1225 = vrot.slane %v1178, %v1224
        %v1226 = vlaneseq
        %v1227 = vshrl.u32 %v1226, 7
        %v1228 = vsub.s32 3, %v1227
        %v1229 = vrot.slane %v1178, %v1228
        %v1230 = vlaneseq
        %v1231 = vshrl.u32 %v1230, 7
        %v1232 = vsub.s32 0, %v1231
        %v1233 = vrot.slane %v1180, %v1232
        %v1234 = vlaneseq
        %v1235 = vshrl.u32 %v1234, 7
        %v1236 = vsub.s32 1, %v1235
        %v1237 = vrot.slane %v1180, %v1236
        %v1238 = vlaneseq
        %v1239 = vshrl.u32 %v1238, 7
        %v1240 = vsub.s32 2, %v1239
        %v1241 = vrot.slane %v1180, %v1240
        %v1242 = vlaneseq
        %v1243 = vshrl.u32 %v1242, 7
        %v1244 = vsub.s32 3, %v1243
        %v1245 = vrot.slane %v1180, %v1244
        %v1246 = vlaneseq
        %v1247 = vshrl.u32 %v1246, 7
        %v1248 = vsub.s32 0, %v1247
        %v1249 = vrot.slane %v1163, %v1248
        %v1250 = vlaneseq
        %v1251 = vshrl.u32 %v1250, 7
        %v1252 = vsub.s32 1, %v1251
        %v1253 = vrot.slane %v1163, %v1252
        %v1254 = vlaneseq
        %v1255 = vshrl.u32 %v1254, 7
        %v1256 = vsub.s32 2, %v1255
        %v1257 = vrot.slane %v1163, %v1256
        %v1258 = vlaneseq
        %v1259 = vshrl.u32 %v1258, 7
        %v1260 = vsub.s32 3, %v1259
        %v1261 = vrot.slane %v1163, %v1260
        %v1262 = vlaneseq
        %v1263 = vshrl.u32 %v1262, 7
        %v1264 = vsub.s32 0, %v1263
        %v1265 = vrot.slane %v1177, %v1264
        %v1266 = vlaneseq
        %v1267 = vshrl.u32 %v1266, 7
        %v1268 = vsub.s32 1, %v1267
        %v1269 = vrot.slane %v1177, %v1268
        %v1270 = vlaneseq
        %v1271 = vshrl.u32 %v1270, 7
        %v1272 = vsub.s32 2, %v1271
        %v1273 = vrot.slane %v1177, %v1272
        %v1274 = vlaneseq
        %v1275 = vshrl.u32 %v1274, 7
        %v1276 = vsub.s32 3, %v1275
        %v1277 = vrot.slane %v1177, %v1276
        %v1278 = vlaneseq
        %v1279 = vshrl.u32 %v1278, 7
        %v1280 = vsub.s32 0, %v1279
        %v1281 = vrot.slane %v1179, %v1280
        %v1282 = vlaneseq
        %v1283 = vshrl.u32 %v1282, 7
        %v1284 = vsub.s32 1, %v1283
        %v1285 = vrot.slane %v1179, %v1284
        %v1286 = vlaneseq
        %v1287 = vshrl.u32 %v1286, 7
        %v1288 = vsub.s32 2, %v1287
        %v1289 = vrot.slane %v1179, %v1288
        %v1290 = vlaneseq
        %v1291 = vshrl.u32 %v1290, 7
        %v1292 = vsub.s32 3, %v1291
        %v1293 = vrot.slane %v1179, %v1292
        %v1294 = vlaneseq
        %v1295 = vshrl.u32 %v1294, 7
        %v1296 = vsub.s32 0, %v1295
        %v1297 = vrot.slane %v1181, %v1296
        %v1298 = vlaneseq
        %v1299 = vshrl.u32 %v1298, 7
        %v1300 = vsub.s32 1, %v1299
        %v1301 = vrot.slane %v1181, %v1300
        %v1302 = vlaneseq
        %v1303 = vshrl.u32 %v1302, 7
        %v1304 = vsub.s32 2, %v1303
        %v1305 = vrot.slane %v1181, %v1304
        %v1306 = vlaneseq
        %v1307 = vshrl.u32 %v1306, 7
        %v1308 = vsub.s32 3, %v1307
        %v1309 = vrot.slane %v1181, %v1308
        %v1310 = vcombine.low %v1185, %v1189
        %v1311 = vcombine.low %v1193, %v1197
        %v1313 = vunpack.c.l.s4 1983009808
        %v1314 = vunpack.c.0.s8 %v1313
        %v1315 = vlaneseq
        %v1316 = vshrl.u32 %v1315, 7
        %v1317 = vsub.s32 %v1314, %v1316
        %v1318 = vrot.slane %v1310, %v1317
        %v1320 = vunpack.c.l.s4 1983009808
        %v1321 = vunpack.c.0.s8 %v1320
        %v1322 = vlaneseq
        %v1323 = vshrl.u32 %v1322, 7
        %v1324 = vsub.s32 %v1321, %v1323
        %v1325 = vrot.slane %v1311, %v1324
        %v1326 = vcombine.low %v1318, %v1325
        %v1327 = vcombine.low %v1201, %v1205
        %v1328 = vcombine.low %v1209, %v1213
        %v1330 = vunpack.c.l.s4 1983009808
        %v1331 = vunpack.c.0.s8 %v1330
        %v1332 = vlaneseq
        %v1333 = vshrl.u32 %v1332, 7
        %v1334 = vsub.s32 %v1331, %v1333
        %v1335 = vrot.slane %v1327, %v1334
        %v1337 = vunpack.c.l.s4 1983009808
        %v1338 = vunpack.c.0.s8 %v1337
        %v1339 = vlaneseq
        %v1340 = vshrl.u32 %v1339, 7
        %v1341 = vsub.s32 %v1338, %v1340
        %v1342 = vrot.slane %v1328, %v1341
        %v1343 = vcombine.low %v1335, %v1342
        %v1344 = vcombine.low %v1217, %v1221
        %v1345 = vcombine.low %v1225, %v1229
        %v1347 = vunpack.c.l.s4 1983009808
        %v1348 = vunpack.c.0.s8 %v1347
        %v1349 = vlaneseq
        %v1350 = vshrl.u32 %v1349, 7
        %v1351 = vsub.s32 %v1348, %v1350
        %v1352 = vrot.slane %v1344, %v1351
        %v1354 = vunpack.c.l.s4 1983009808
        %v1355 = vunpack.c.0.s8 %v1354
        %v1356 = vlaneseq
        %v1357 = vshrl.u32 %v1356, 7
        %v1358 = vsub.s32 %v1355, %v1357
        %v1359 = vrot.slane %v1345, %v1358
        %v1360 = vcombine.low %v1352, %v1359
        %v1361 = vcombine.low %v1233, %v1237
        %v1362 = vcombine.low %v1241, %v1245
        %v1364 = vunpack.c.l.s4 1983009808
        %v1365 = vunpack.c.0.s8 %v1364
        %v1366 = vlaneseq
        %v1367 = vshrl.u32 %v1366, 7
        %v1368 = vsub.s32 %v1365, %v1367
        %v1369 = vrot.slane %v1361, %v1368
        %v1371 = vunpack.c.l.s4 1983009808
        %v1372 = vunpack.c.0.s8 %v1371
        %v1373 = vlaneseq
        %v1374 = vshrl.u32 %v1373, 7
        %v1375 = vsub.s32 %v1372, %v1374
        %v1376 = vrot.slane %v1362, %v1375
        %v1377 = vcombine.low %v1369, %v1376
        %v1378 = vcombine.low %v1249, %v1253
        %v1379 = vcombine.low %v1257, %v1261
        %v1381 = vunpack.c.l.s4 1983009808
        %v1382 = vunpack.c.0.s8 %v1381
        %v1383 = vlaneseq
        %v1384 = vshrl.u32 %v1383, 7
        %v1385 = vsub.s32 %v1382, %v1384
        %v1386 = vrot.slane %v1378, %v1385
        %v1388 = vunpack.c.l.s4 1983009808
        %v1389 = vunpack.c.0.s8 %v1388
        %v1390 = vlaneseq
        %v1391 = vshrl.u32 %v1390, 7
        %v1392 = vsub.s32 %v1389, %v1391
        %v1393 = vrot.slane %v1379, %v1392
        %v1394 = vcombine.low %v1386, %v1393
        %v1395 = vcombine.low %v1265, %v1269
        %v1396 = vcombine.low %v1273, %v1277
        %v1398 = vunpack.c.l.s4 1983009808
        %v1399 = vunpack.c.0.s8 %v1398
        %v1400 = vlaneseq
        %v1401 = vshrl.u32 %v1400, 7
        %v1402 = vsub.s32 %v1399, %v1401
        %v1403 = vrot.slane %v1395, %v1402
        %v1405 = vunpack.c.l.s4 1983009808
        %v1406 = vunpack.c.0.s8 %v1405
        %v1407 = vlaneseq
        %v1408 = vshrl.u32 %v1407, 7
        %v1409 = vsub.s32 %v1406, %v1408
        %v1410 = vrot.slane %v1396, %v1409
        %v1411 = vcombine.low %v1403, %v1410
        %v1412 = vcombine.low %v1281, %v1285
        %v1413 = vcombine.low %v1289, %v1293
        %v1415 = vunpack.c.l.s4 1983009808
        %v1416 = vunpack.c.0.s8 %v1415
        %v1417 = vlaneseq
        %v1418 = vshrl.u32 %v1417, 7
        %v1419 = vsub.s32 %v1416, %v1418
        %v1420 = vrot.slane %v1412, %v1419
        %v1422 = vunpack.c.l.s4 1983009808
        %v1423 = vunpack.c.0.s8 %v1422
        %v1424 = vlaneseq
        %v1425 = vshrl.u32 %v1424, 7
        %v1426 = vsub.s32 %v1423, %v1425
        %v1427 = vrot.slane %v1413, %v1426
        %v1428 = vcombine.low %v1420, %v1427
        %v1429 = vcombine.low %v1297, %v1301
        %v1430 = vcombine.low %v1305, %v1309
        %v1432 = vunpack.c.l.s4 1983009808
        %v1433 = vunpack.c.0.s8 %v1432
        %v1434 = vlaneseq
        %v1435 = vshrl.u32 %v1434, 7
        %v1436 = vsub.s32 %v1433, %v1435
        %v1437 = vrot.slane %v1429, %v1436
        %v1439 = vunpack.c.l.s4 1983009808
        %v1440 = vunpack.c.0.s8 %v1439
        %v1441 = vlaneseq
        %v1442 = vshrl.u32 %v1441, 7
        %v1443 = vsub.s32 %v1440, %v1442
        %v1444 = vrot.slane %v1430, %v1443
        %v1445 = vcombine.low %v1437, %v1444
        %v1446 = vcombine.low %v1326, %v1343
        %v1447 = vcombine.high %v1326, %v1343
        %v1448 = vcombine.low %v1360, %v1377
        %v1449 = vcombine.high %v1360, %v1377
        %v1451 = vunpack.c.l.s4 1983009808
        %v1452 = vunpack.c.0.s8 %v1451
        %v1453 = vlaneseq
        %v1454 = vshrl.u32 %v1453, 7
        %v1455 = vsub.s32 %v1452, %v1454
        %v1456 = vrot.slane %v1446, %v1455
        %v1458 = vunpack.c.l.s4 1983009808
        %v1459 = vunpack.c.0.s8 %v1458
        %v1460 = vlaneseq
        %v1461 = vshrl.u32 %v1460, 7
        %v1462 = vsub.s32 %v1459, %v1461
        %v1463 = vrot.slane %v1447, %v1462
        %v1465 = vunpack.c.l.s4 1983009808
        %v1466 = vunpack.c.0.s8 %v1465
        %v1467 = vlaneseq
        %v1468 = vshrl.u32 %v1467, 7
        %v1469 = vsub.s32 %v1466, %v1468
        %v1470 = vrot.slane %v1448, %v1469
        %v1472 = vunpack.c.l.s4 1983009808
        %v1473 = vunpack.c.0.s8 %v1472
        %v1474 = vlaneseq
        %v1475 = vshrl.u32 %v1474, 7
        %v1476 = vsub.s32 %v1473, %v1475
        %v1477 = vrot.slane %v1449, %v1476
        %v1478 = vcombine.low %v1456, %v1470
        %v1479 = vcombine.high %v1456, %v1470
        %v1480 = vcombine.low %v1463, %v1477
        %v1481 = vcombine.high %v1463, %v1477
        %v1482 = vcombine.low %v1394, %v1411
        %v1483 = vcombine.high %v1394, %v1411
        %v1484 = vcombine.low %v1428, %v1445
        %v1485 = vcombine.high %v1428, %v1445
        %v1487 = vunpack.c.l.s4 1983009808
        %v1488 = vunpack.c.0.s8 %v1487
        %v1489 = vlaneseq
        %v1490 = vshrl.u32 %v1489, 7
        %v1491 = vsub.s32 %v1488, %v1490
        %v1492 = vrot.slane %v1482, %v1491
        %v1494 = vunpack.c.l.s4 1983009808
        %v1495 = vunpack.c.0.s8 %v1494
        %v1496 = vlaneseq
        %v1497 = vshrl.u32 %v1496, 7
        %v1498 = vsub.s32 %v1495, %v1497
        %v1499 = vrot.slane %v1483, %v1498
        %v1501 = vunpack.c.l.s4 1983009808
        %v1502 = vunpack.c.0.s8 %v1501
        %v1503 = vlaneseq
        %v1504 = vshrl.u32 %v1503, 7
        %v1505 = vsub.s32 %v1502, %v1504
        %v1506 = vrot.slane %v1484, %v1505
        %v1508 = vunpack.c.l.s4 1983009808
        %v1509 = vunpack.c.0.s8 %v1508
        %v1510 = vlaneseq
        %v1511 = vshrl.u32 %v1510, 7
        %v1512 = vsub.s32 %v1509, %v1511
        %v1513 = vrot.slane %v1485, %v1512
        %v1514 = vcombine.low %v1492, %v1506
        %v1515 = vcombine.high %v1492, %v1506
        %v1516 = vcombine.low %v1499, %v1513
        %v1517 = vcombine.high %v1499, %v1513
        %v1526 = vadd.f32 %v817, %v1478
        %v1527 = vadd.f32 %v818, %v1479
        %v1528 = vadd.f32 %v819, %v1480
        %v1529 = vadd.f32 %v820, %v1481
        %v1530 = vadd.f32 %v821, %v1514
        %v1531 = vadd.f32 %v822, %v1515
        %v1532 = vadd.f32 %v823, %v1516
        %v1533 = vadd.f32 %v824, %v1517
        %v1534 = vpack.c.bf16 %v407, %v407
        %v1535 = vpack.c.bf16 %v408, %v408
        %v1536 = vpack.c.bf16 %v409, %v409
        %v1537 = vpack.c.bf16 %v410, %v410
        %v1538 = vpack.c.bf16 %v411, %v411
        %v1539 = vpack.c.bf16 %v412, %v412
        %v1540 = vpack.c.bf16 %v413, %v413
        %v1541 = vpack.c.bf16 %v414, %v414
        %v1542 = vpack.c.bf16 %v415, %v415
        %v1543 = vpack.c.bf16 %v416, %v416
        %v1544 = vpack.c.bf16 %v417, %v417
        %v1545 = vpack.c.bf16 %v418, %v418
        %v1546 = vpack.c.bf16 %v419, %v419
        %v1547 = vpack.c.bf16 %v420, %v420
        %v1548 = vpack.c.bf16 %v421, %v421
        %v1549 = vpack.c.bf16 %v422, %v422
        %s1550 = scalar_lea.vmem [#allocation5], 384
        %v1551 = vld [vmem:[%s1550] sm:$0xff]
        %v1552 = vld [vmem:[%s1550 + $0x8] sm:$0xff]
        %v1553 = vld [vmem:[%s1550 + $0x10] sm:$0xff]
        %v1554 = vld [vmem:[%s1550 + $0x18] sm:$0xff]
        %v1555 = vld [vmem:[%s1550 + $0x20] sm:$0xff]
        %v1556 = vld [vmem:[%s1550 + $0x28] sm:$0xff]
        %v1557 = vld [vmem:[%s1550 + $0x30] sm:$0xff]
        %v1558 = vld [vmem:[%s1550 + $0x38] sm:$0xff]
        %v1559 = vld [vmem:[%s1550 + $0x40] sm:$0xff]
        %v1560 = vld [vmem:[%s1550 + $0x48] sm:$0xff]
        %v1561 = vld [vmem:[%s1550 + $0x50] sm:$0xff]
        %v1562 = vld [vmem:[%s1550 + $0x58] sm:$0xff]
        %v1563 = vld [vmem:[%s1550 + $0x60] sm:$0xff]
        %v1564 = vld [vmem:[%s1550 + $0x68] sm:$0xff]
        %v1565 = vld [vmem:[%s1550 + $0x70] sm:$0xff]
        %v1566 = vld [vmem:[%s1550 + $0x78] sm:$0xff]
        %v1567 = vld [vmem:[%s1550 + $0x80] sm:$0xff]
        %v1568 = vld [vmem:[%s1550 + $0x88] sm:$0xff]
        %v1569 = vld [vmem:[%s1550 + $0x90] sm:$0xff]
        %v1570 = vld [vmem:[%s1550 + $0x98] sm:$0xff]
        %v1571 = vld [vmem:[%s1550 + $0xa0] sm:$0xff]
        %v1572 = vld [vmem:[%s1550 + $0xa8] sm:$0xff]
        %v1573 = vld [vmem:[%s1550 + $0xb0] sm:$0xff]
        %v1574 = vld [vmem:[%s1550 + $0xb8] sm:$0xff]
        %v1591 = vunpack.c.l.b16 %v1534
        %v1592 = vunpack.c.l.b16 %v1535
        %v1593 = vunpack.c.l.b16 %v1536
        %v1594 = vunpack.c.l.b16 %v1537
        %v1595 = vunpack.c.l.b16 %v1538
        %v1596 = vunpack.c.l.b16 %v1539
        %v1597 = vunpack.c.l.b16 %v1540
        %v1598 = vunpack.c.l.b16 %v1541
        %v1599 = vunpack.c.l.b16 %v1542
        %v1600 = vunpack.c.l.b16 %v1543
        %v1601 = vunpack.c.l.b16 %v1544
        %v1602 = vunpack.c.l.b16 %v1545
        %v1603 = vunpack.c.l.b16 %v1546
        %v1604 = vunpack.c.l.b16 %v1547
        %v1605 = vunpack.c.l.b16 %v1548
        %v1606 = vunpack.c.l.b16 %v1549
        %v1607 = vrot.slane %v1592, 7
        %v1608 = vsel %vm476, %v1607, %v1591
        %v1609 = vrot.slane %v1593, 6
        %v1610 = vsel %vm479, %v1609, %v1608
        %v1611 = vrot.slane %v1594, 5
        %v1612 = vsel %vm482, %v1611, %v1610
        %v1613 = vrot.slane %v1595, 4
        %v1614 = vsel %vm893, %v1613, %v1612
        %v1615 = vrot.slane %v1596, 3
        %v1616 = vsel %vm896, %v1615, %v1614
        %v1617 = vrot.slane %v1597, 2
        %v1618 = vsel %vm899, %v1617, %v1616
        %v1619 = vrot.slane %v1598, 1
        %v1620 = vsel %vm902, %v1619, %v1618
        %v1621 = vrot.slane %v1600, 7
        %v1622 = vsel %vm476, %v1621, %v1599
        %v1623 = vrot.slane %v1601, 6
        %v1624 = vsel %vm479, %v1623, %v1622
        %v1625 = vrot.slane %v1602, 5
        %v1626 = vsel %vm482, %v1625, %v1624
        %v1627 = vrot.slane %v1603, 4
        %v1628 = vsel %vm893, %v1627, %v1626
        %v1629 = vrot.slane %v1604, 3
        %v1630 = vsel %vm896, %v1629, %v1628
        %v1631 = vrot.slane %v1605, 2
        %v1632 = vsel %vm899, %v1631, %v1630
        %v1633 = vrot.slane %v1606, 1
        %v1634 = vsel %vm902, %v1633, %v1632
        %v1635 = vpack.c.b16 %v1634, %v1620
        %v1660 = vunpack.c.l.b16 %v1551
        %v1661 = vunpack.c.h.b16 %v1551
        %v1662 = vunpack.c.l.b16 %v1552
        %v1663 = vunpack.c.h.b16 %v1552
        %v1664 = vunpack.c.l.b16 %v1553
        %v1665 = vunpack.c.h.b16 %v1553
        %v1666 = vunpack.c.l.b16 %v1554
        %v1667 = vunpack.c.h.b16 %v1554
        %v1668 = vunpack.c.l.b16 %v1555
        %v1669 = vunpack.c.h.b16 %v1555
        %v1670 = vunpack.c.l.b16 %v1556
        %v1671 = vunpack.c.h.b16 %v1556
        %v1672 = vunpack.c.l.b16 %v1557
        %v1673 = vunpack.c.h.b16 %v1557
        %v1674 = vunpack.c.l.b16 %v1558
        %v1675 = vunpack.c.h.b16 %v1558
        %v1676 = vunpack.c.l.b16 %v1559
        %v1677 = vunpack.c.h.b16 %v1559
        %v1678 = vunpack.c.l.b16 %v1560
        %v1679 = vunpack.c.h.b16 %v1560
        %v1680 = vunpack.c.l.b16 %v1561
        %v1681 = vunpack.c.h.b16 %v1561
        %v1682 = vunpack.c.l.b16 %v1562
        %v1683 = vunpack.c.h.b16 %v1562
        %v1684 = vunpack.c.l.b16 %v1563
        %v1685 = vunpack.c.h.b16 %v1563
        %v1686 = vunpack.c.l.b16 %v1564
        %v1687 = vunpack.c.h.b16 %v1564
        %v1688 = vunpack.c.l.b16 %v1565
        %v1689 = vunpack.c.h.b16 %v1565
        %v1690 = vunpack.c.l.b16 %v1566
        %v1691 = vunpack.c.h.b16 %v1566
        %v1692 = vunpack.c.l.b16 %v1567
        %v1693 = vunpack.c.h.b16 %v1567
        %v1694 = vunpack.c.l.b16 %v1568
        %v1695 = vunpack.c.h.b16 %v1568
        %v1696 = vunpack.c.l.b16 %v1569
        %v1697 = vunpack.c.h.b16 %v1569
        %v1698 = vunpack.c.l.b16 %v1570
        %v1699 = vunpack.c.h.b16 %v1570
        %v1700 = vunpack.c.l.b16 %v1571
        %v1701 = vunpack.c.h.b16 %v1571
        %v1702 = vunpack.c.l.b16 %v1572
        %v1703 = vunpack.c.h.b16 %v1572
        %v1704 = vunpack.c.l.b16 %v1573
        %v1705 = vunpack.c.h.b16 %v1573
        %v1706 = vunpack.c.l.b16 %v1574
        %v1707 = vunpack.c.h.b16 %v1574
        %v1708 = vpack.c.b16 %v1664, %v1660
        %v1709 = vpack.c.b16 %v1665, %v1661
        %v1710 = vpack.c.b16 %v1666, %v1662
        %v1711 = vpack.c.b16 %v1667, %v1663
        %v1712 = vpack.c.b16 %v1672, %v1668
        %v1713 = vpack.c.b16 %v1673, %v1669
        %v1714 = vpack.c.b16 %v1674, %v1670
        %v1715 = vpack.c.b16 %v1675, %v1671
        %v1716 = vpack.c.b16 %v1680, %v1676
        %v1717 = vpack.c.b16 %v1681, %v1677
        %v1718 = vpack.c.b16 %v1682, %v1678
        %v1719 = vpack.c.b16 %v1683, %v1679
        %v1720 = vpack.c.b16 %v1688, %v1684
        %v1721 = vpack.c.b16 %v1689, %v1685
        %v1722 = vpack.c.b16 %v1690, %v1686
        %v1723 = vpack.c.b16 %v1691, %v1687
        %v1724 = vpack.c.b16 %v1696, %v1692
        %v1725 = vpack.c.b16 %v1697, %v1693
        %v1726 = vpack.c.b16 %v1698, %v1694
        %v1727 = vpack.c.b16 %v1699, %v1695
        %v1728 = vpack.c.b16 %v1704, %v1700
        %v1729 = vpack.c.b16 %v1705, %v1701
        %v1730 = vpack.c.b16 %v1706, %v1702
        %v1731 = vpack.c.b16 %v1707, %v1703
        %v1757 = vsel %vm605, %v1635, 0
        %1759 = vmatprep.subr.bf16.mxu0 %v1709
        %1760 = vmatpush1.bf16.msra.mxu0 %v1708
        %1761 = vmatprep.subr.bf16.mxu0 %v1713
        %1762 = vmatpush1.bf16.msra.mxu0 %v1712
        %1763 = vmatprep.subr.bf16.mxu0 %v1717
        %1764 = vmatpush1.bf16.msra.mxu0 %v1716
        %1765 = vmatprep.subr.bf16.mxu0 %v1721
        %1766 = vmatpush1.bf16.msra.mxu0 %v1720
        %1767 = vmatprep.subr.bf16.mxu0 %v1725
        %1768 = vmatpush1.bf16.msra.mxu0 %v1724
        %1769 = vmatprep.subr.bf16.mxu0 %v1729
        %1770 = vmatpush1.bf16.msra.mxu0 %v1728
        %1771 = vmatprep.subr.bf16.mxu0 0
        %1772 = vmatpush1.bf16.msra.mxu0 0
        %1773 = vmatprep.subr.bf16.mxu0 0
        %1774 = vmatpush1.bf16.msra.mxu0 0
        %1775 = vmatprep.subr.bf16.mxu0 0
        %1776 = vmatpush1.bf16.msra.mxu0 0
        %1777 = vmatprep.subr.bf16.mxu0 0
        %1778 = vmatpush1.bf16.msra.mxu0 0
        %1779 = vmatprep.subr.bf16.mxu0 0
        %1780 = vmatpush1.bf16.msra.mxu0 0
        %1781 = vmatprep.subr.bf16.mxu0 0
        %1782 = vmatpush1.bf16.msra.mxu0 0
        %1783 = vmatprep.subr.bf16.mxu0 0
        %1784 = vmatpush1.bf16.msra.mxu0 0
        %1785 = vmatprep.subr.bf16.mxu0 0
        %1786 = vmatpush1.bf16.msra.mxu0 0
        %1787 = vmatprep.subr.bf16.mxu0 0
        %1788 = vmatpush1.bf16.msra.mxu0 0
        %1789 = vmatprep.subr.bf16.mxu0 0
        %1790 = vmatpush1.bf16.msra.mxu0 0
        %1791 = vmatprep.mubr.bf16.mxu0 0
        %1792 = vmatmul.mubr.bf16.gmra.mrb[0].mxu0 %v1757
        %v1793 = vpop.f32.mrb[0].mxu0
        %v1794 = vadd.f32 0.0, %v1793
        %v1795 = vpop.f32.mrb[0].mxu0
        %v1796 = vadd.f32 0.0, %v1795
        %v1797 = vpop.f32.mrb[0].mxu0
        %v1798 = vadd.f32 0.0, %v1797
        %v1799 = vpop.f32.mrb[0].mxu0
        %v1800 = vadd.f32 0.0, %v1799
        %1801 = vdwg.mxu0
        %1802 = vmatprep.subr.bf16.mxu0 %v1711
        %1803 = vmatpush1.bf16.msra.mxu0 %v1710
        %1804 = vmatprep.subr.bf16.mxu0 %v1715
        %1805 = vmatpush1.bf16.msra.mxu0 %v1714
        %1806 = vmatprep.subr.bf16.mxu0 %v1719
        %1807 = vmatpush1.bf16.msra.mxu0 %v1718
        %1808 = vmatprep.subr.bf16.mxu0 %v1723
        %1809 = vmatpush1.bf16.msra.mxu0 %v1722
        %1810 = vmatprep.subr.bf16.mxu0 %v1727
        %1811 = vmatpush1.bf16.msra.mxu0 %v1726
        %1812 = vmatprep.subr.bf16.mxu0 %v1731
        %1813 = vmatpush1.bf16.msra.mxu0 %v1730
        %1814 = vmatprep.subr.bf16.mxu0 0
        %1815 = vmatpush1.bf16.msra.mxu0 0
        %1816 = vmatprep.subr.bf16.mxu0 0
        %1817 = vmatpush1.bf16.msra.mxu0 0
        %1818 = vmatprep.subr.bf16.mxu0 0
        %1819 = vmatpush1.bf16.msra.mxu0 0
        %1820 = vmatprep.subr.bf16.mxu0 0
        %1821 = vmatpush1.bf16.msra.mxu0 0
        %1822 = vmatprep.subr.bf16.mxu0 0
        %1823 = vmatpush1.bf16.msra.mxu0 0
        %1824 = vmatprep.subr.bf16.mxu0 0
        %1825 = vmatpush1.bf16.msra.mxu0 0
        %1826 = vmatprep.subr.bf16.mxu0 0
        %1827 = vmatpush1.bf16.msra.mxu0 0
        %1828 = vmatprep.subr.bf16.mxu0 0
        %1829 = vmatpush1.bf16.msra.mxu0 0
        %1830 = vmatprep.subr.bf16.mxu0 0
        %1831 = vmatpush1.bf16.msra.mxu0 0
        %1832 = vmatprep.subr.bf16.mxu0 0
        %1833 = vmatpush1.bf16.msra.mxu0 0
        %1834 = vmatprep.mubr.bf16.mxu0 0
        %1835 = vmatmul.mubr.bf16.gmra.mrb[0].mxu0 %v1757
        %v1836 = vpop.f32.mrb[0].mxu0
        %v1837 = vadd.f32 0.0, %v1836
        %v1838 = vpop.f32.mrb[0].mxu0
        %v1839 = vadd.f32 0.0, %v1838
        %v1840 = vpop.f32.mrb[0].mxu0
        %v1841 = vadd.f32 0.0, %v1840
        %v1842 = vpop.f32.mrb[0].mxu0
        %v1843 = vadd.f32 0.0, %v1842
        %1844 = vdwg.mxu0
        %v1845 = vadd.f32 %v1526, %v1794
        %v1846 = vadd.f32 %v1527, %v1796
        %v1847 = vadd.f32 %v1528, %v1837
        %v1848 = vadd.f32 %v1529, %v1839
        %v1849 = vadd.f32 %v1530, %v1798
        %v1850 = vadd.f32 %v1531, %v1800
        %v1851 = vadd.f32 %v1532, %v1841
        %v1852 = vadd.f32 %v1533, %v1843
        %1853 = vst [vmem:[%s221] sm:$0xff] %v1845
        %1854 = vst [vmem:[%s221 + $0x8] sm:$0xff] %v1846
        %1855 = vst [vmem:[%s221 + $0x10] sm:$0xff] %v1847
        %1856 = vst [vmem:[%s221 + $0x18] sm:$0xff] %v1848
        %1857 = vst [vmem:[%s221 + $0x20] sm:$0xff] %v1849
        %1858 = vst [vmem:[%s221 + $0x28] sm:$0xff] %v1850
        %1859 = vst [vmem:[%s221 + $0x30] sm:$0xff] %v1851
        %1860 = vst [vmem:[%s221 + $0x38] sm:$0xff] %v1852
        %s1861 = sand.u32 %s113, 1
        %s1862 = scalar_lea.sflag [#allocation4], %s1861
        %s1863 = sand.u32 %s113, 1
        %s1864 = smul.addr %s1863, 64
        %s1865 = scalar_lea.vmem [#allocation7], %s1864
        // Predicated region
        $region41: #{tpu_custom_call.1} parent=31 // pred_check
          %p1866 = pneg %p123
        $region42: #{tpu_custom_call.1} parent=31 // pred_check_branch
          %1868 = sbr.rel (%p1866) target = $region44
        $region43: #{tpu_custom_call.1} parent=31 // pred_region
          %s1869 = smul.u32 2, %s26
          %s1871 = ssub.s32 1024, 1024
          %1872 = vsyncadd %s1862, %s1871
          %s1873 = smul.addr %s1869, 4
          %s1874 = smul.addr %s25, 8
          %s1875 = sadd.s32 %s1873, %s1874
          %s1876 = smul.addr %s1875, 128
          %s1877 = scalar_lea.hbm %s3, %s1876
          %s1878 = sshll.u32 %s1865, 4
          %s1879 = int_to_ptr.vmem [resolvable:$true] %s1878
          %1884 = dma.vmem_to_hbm [thread:$0]  %s1879, 1024, %s1877, %s1862, 512, 512, 32
        $region44: #{tpu_custom_call.1} parent=31 // pred_fallthru
          _
      $region32: #{tpu_custom_call.1} parent=5 // pred_fallthru
        _
      %p1885 = scmp.le.s32.totalorder 2, %s16
      // Predicated region
      $region45: #{tpu_custom_call.1} parent=5 // pred_check
        %p1886 = pneg %p1885
      $region46: #{tpu_custom_call.1} parent=5 // pred_check_branch
        %1888 = sbr.rel (%p1886) target = $region48
      $region47: #{tpu_custom_call.1} parent=5 // pred_region
        %s1889 = ssub.s32 %s16, 2
        // Predicated region
        $region49: #{tpu_custom_call.1} parent=47 // pred_check
          %p1890 = pneg %p129
        $region50: #{tpu_custom_call.1} parent=47 // pred_check_branch
          %1892 = sbr.rel (%p1890) target = $region52
        $region51: #{tpu_custom_call.1} parent=47 // pred_region
          %s1893 = sand.u32 %s114, 1
          %s1894 = scalar_lea.sflag [#allocation4], %s1893
          %s1895 = sand.u32 %s114, 1
          %s1896 = smul.addr %s1895, 64
          %s1897 = scalar_lea.vmem [#allocation7], %s1896
          %1898 = dma.done %s1894, 1024
        $region52: #{tpu_custom_call.1} parent=47 // pred_fallthru
          _
      $region48: #{tpu_custom_call.1} parent=5 // pred_fallthru
        _
    $region6: #{tpu_custom_call.1} parent=1 // loop_footer
      %s20 = sadd.s32 1, %s16
    $region7: #{tpu_custom_call.1} parent=1 // loop_footer_branch
      %15 = sbr.rel target = $region3
    $region8: #{tpu_custom_call.1} parent=1 // loop_exit
      _
    %1899 = vsyncpa [#allocation3], 1
    %s1900 = scalar_lea.sflag [#allocation3], 1
    %1901 = vsyncpa %s1900, 1
    %1902 = vsyncpa [#allocation6], 1
    %1903 = vsyncpa [#allocation4], 1
    %s1904 = scalar_lea.sflag [#allocation4], 1
    %1905 = vsyncpa %s1904, 1

</llo_original>
